<compile_context>
chip_gen: v5e
topology: v5e:2x2
jax: 0.10.0
libtpu: 0.0.40
codegen_flags: <defaults>
</compile_context>

<pallas_src>
import functools

import jax
import jax.numpy as jnp
import numpy as np
from jax import lax
from jax.experimental import pallas as pl
from jax.experimental.pallas import tpu as pltpu

_MAX_TILE_ROWS = 2048   # keeps the (tb, z_dim)/(tb, C) VMEM blocks small
_CHUNK_ROWS = 128       # batch rows per inner (unrolled) chunk -> ~40 live vregs


def aux_mlp_kernel(z_ref, w1t_ref, b1_ref, w2t_ref, b2_ref, w3t_ref, b3_ref,
                   out_ref, *, block_rows):
    """Fused 3-layer MLP, batch-major, chunked along the batch (sublane) axis.

    z_ref   : (tb, z_dim)        batch tile
    w*t_ref : (in, out)          weights pre-transposed to input-major
    b*_ref  : (1, out)           row biases
    out_ref : (tb, num_classes)  logits tile
    """
    w1t = w1t_ref[...]           # (z_dim, H)
    b1 = b1_ref[...]             # (1, H)
    w2t = w2t_ref[...]           # (H, H)
    b2 = b2_ref[...]             # (1, H)
    w3t = w3t_ref[...]           # (H, C)
    b3 = b3_ref[...]             # (1, C)
    z_dim = w1t.shape[0]
    n_chunks = z_ref.shape[0] // block_rows   # static

    def body(c, carry):
        r0 = pl.multiple_of(c * block_rows, block_rows)
        zc = z_ref[pl.ds(r0, block_rows), :]                       # (bc, z_dim)

        # ---- Layer 1: K = z_dim is tiny (2 by default) -> VPU broadcast FMAs
        #      seeded with the bias.  General path keeps the MXU.
        if z_dim <= 8:
            h = b1 + zc[:, 0:1] * w1t[0:1, :]
            for k in range(1, z_dim):
                h = h + zc[:, k:k + 1] * w1t[k:k + 1, :]
        else:
            h = jnp.dot(zc, w1t, preferred_element_type=jnp.float32) + b1
        h = jnp.maximum(h, 0.0)                                     # (bc, H)

        # ---- Layer 2: (bc, H) @ (H, H) on the MXU ----------------------------
        h = jnp.dot(h, w2t, preferred_element_type=jnp.float32) + b2
        h = jnp.maximum(h, 0.0)                                     # (bc, H)

        # ---- Layer 3: (bc, H) @ (H, C) ---------------------------------------
        logits = jnp.dot(h, w3t, preferred_element_type=jnp.float32) + b3
        out_ref[pl.ds(r0, block_rows), :] = logits.astype(out_ref.dtype)
        return carry

    lax.fori_loop(0, n_chunks, body, 0, unroll=True)


@functools.partial(jax.jit, static_argnames=("tb", "block_rows"))
def _aux_forward_impl(z, params, *, tb, block_rows):
    w1, b1, w2, b2, w3, b3 = params        # PyTorch layout: w (out,in), b (out,)
    B, z_dim = z.shape
    H = w1.shape[0]
    C = w3.shape[0]

    n_steps = pl.cdiv(B, tb)
    Bp = tb * n_steps
    zp = z if Bp == B else jnp.pad(z, ((0, Bp - B), (0, 0)))

    # Constant-shaped (<= 16 KB) weight re-layouts; NOT the batch-sized wrapper
    # transposes the perf review flagged (those are gone).
    w1t, w2t, w3t = w1.T, w2.T, w3.T
    b1r, b2r, b3r = b1.reshape(1, H), b2.reshape(1, H), b3.reshape(1, C)

    const_spec = lambda shape: pl.BlockSpec(shape, lambda i: (0, 0))

    logits = pl.pallas_call(
        functools.partial(aux_mlp_kernel, block_rows=block_rows),
        out_shape=jax.ShapeDtypeStruct((Bp, C), jnp.float32),
        grid_spec=pltpu.PrefetchScalarGridSpec(
            num_scalar_prefetch=0,
            grid=(n_steps,),
            in_specs=[
                pl.BlockSpec((tb, z_dim), lambda i: (i, 0)),   # z batch tile
                const_spec((z_dim, H)),                         # W1^T
                const_spec((1, H)),                             # b1
                const_spec((H, H)),                             # W2^T
                const_spec((1, H)),                             # b2
                const_spec((H, C)),                             # W3^T
                const_spec((1, C)),                             # b3
            ],
            out_specs=pl.BlockSpec((tb, C), lambda i: (i, 0)),
        ),
        # Batch axis is embarrassingly parallel -> megacore sharding when the
        # grid has 2 steps (v7x / other 2-TC chips).
        compiler_params=pltpu.CompilerParams(
            dimension_semantics=("parallel",)),
    )(zp, w1t, b1r, w2t, b2r, w3t, b3r)

    return logits if Bp == B else logits[:B]


def _tensorcores_per_chip() -> int:
    """Heuristic TCs per JAX device: v5e/v6e -> 1, v4/v5p/v7x -> 2."""
    try:
        kind = jax.devices()[0].device_kind.lower()
    except Exception:
        return 1
    if any(tag in kind for tag in ("lite", "v5e", "v6e")):
        return 1
    return 2


def _round_up(x, m):
    return ((x + m - 1) // m) * m


def aux_forward(z, params, *, tb=None):
    """Returns the Categorical logits q(y|z), shape (B, num_classes)."""
    B = z.shape[0]
    if tb is None:
        cores = _tensorcores_per_chip()
        steps = cores if (cores > 1 and B >= 256) else 1   # 1 step/TC
        tb = -(-B // steps)
        tb = _round_up(tb, 128) if tb >= 128 else _round_up(tb, 8)
        tb = min(tb, _MAX_TILE_ROWS)
    block_rows = _CHUNK_ROWS if (tb % _CHUNK_ROWS == 0) else tb
    return _aux_forward_impl(z, params, tb=tb, block_rows=block_rows)


def init_aux_params(key, z_dim=2, hidden=64, num_classes=2):
    """Deterministic init mirroring nn.Linear defaults, PyTorch (out,in) layout."""
    ks = jax.random.split(key, 6)

    def linear(kw, kb, fan_in, fan_out):
        bound = 1.0 / np.sqrt(fan_in)
        w = jax.random.uniform(kw, (fan_out, fan_in), jnp.float32, -bound, bound)
        b = jax.random.uniform(kb, (fan_out,), jnp.float32, -bound, bound)
        return w, b

    w1, b1 = linear(ks[0], ks[1], z_dim, hidden)
    w2, b2 = linear(ks[2], ks[3], hidden, hidden)
    w3, b3 = linear(ks[4], ks[5], hidden, num_classes)
    return (w1, b1, w2, b2, w3, b3)


def aux_forward_ref(z, params):
    w1, b1, w2, b2, w3, b3 = params
    hi = jax.lax.Precision.HIGHEST
    h1 = jnp.maximum(jnp.dot(z, w1.T, precision=hi) + b1, 0.0)
    h2 = jnp.maximum(jnp.dot(h1, w2.T, precision=hi) + b2, 0.0)
    return jnp.dot(h2, w3.T, precision=hi) + b3


if __name__ == "__main__":
    key = jax.random.PRNGKey(0)
    k_param, k_z = jax.random.split(key)

    z_dim, num_classes, hidden = 2, 2, 64
    B = 1000   # deliberately not a tile multiple -> exercises the padding path
    params = init_aux_params(k_param, z_dim=z_dim, hidden=hidden,
                             num_classes=num_classes)
    z = jax.random.normal(k_z, (B, z_dim), jnp.float32)

    logits = aux_forward(z, params)        # grid = 1 (v5e/v6e) or 2 (v7x)
    jax.block_until_ready(logits)

    # Sanity check against the plain-JAX reference of the same MLP (all f32).
    ref = aux_forward_ref(z, params)
    np.testing.assert_allclose(np.asarray(logits), np.asarray(ref),
                               rtol=1e-4, atol=1e-4)

    # The returned Categorical is parameterized by these logits; probabilities
    # (if needed) are softmax(logits) computed in plain JAX glue:
    _probs = jax.nn.softmax(logits, axis=-1)
    jax.block_until_ready(_probs)

    print("KERNEL_OK")
</pallas_src>

<mosaic_0001>
module attributes {stable_mosaic.version = 11 : i64} {
  func.func @aux_mlp_kernel(%arg0: i32, %arg1: memref<512x2xf32, #tpu.memory_space<vmem>>, %arg2: memref<2x64xf32, #tpu.memory_space<vmem>>, %arg3: memref<1x64xf32, #tpu.memory_space<vmem>>, %arg4: memref<64x64xf32, #tpu.memory_space<vmem>>, %arg5: memref<1x64xf32, #tpu.memory_space<vmem>>, %arg6: memref<64x2xf32, #tpu.memory_space<vmem>>, %arg7: memref<1x2xf32, #tpu.memory_space<vmem>>, %arg8: memref<512x2xf32, #tpu.memory_space<vmem>>) attributes {dimension_semantics = [#tpu.dimension_semantics<parallel>], iteration_bounds = array<i64: 2>, scalar_prefetch = 0 : i64, scratch_operands = 0 : i64, tpu.core_type = #tpu.core_type<tc>, window_params = [{transform_indices = @transform_0, window_bounds = array<i64: 512, 2>}, {pipeline_mode = #tpu.pipeline_mode<synchronous>, transform_indices = @transform_1, window_bounds = array<i64: 2, 64>}, {pipeline_mode = #tpu.pipeline_mode<synchronous>, transform_indices = @transform_2, window_bounds = array<i64: 1, 64>}, {pipeline_mode = #tpu.pipeline_mode<synchronous>, transform_indices = @transform_3, window_bounds = array<i64: 64, 64>}, {pipeline_mode = #tpu.pipeline_mode<synchronous>, transform_indices = @transform_4, window_bounds = array<i64: 1, 64>}, {pipeline_mode = #tpu.pipeline_mode<synchronous>, transform_indices = @transform_5, window_bounds = array<i64: 64, 2>}, {pipeline_mode = #tpu.pipeline_mode<synchronous>, transform_indices = @transform_6, window_bounds = array<i64: 1, 2>}, {transform_indices = @transform_7, window_bounds = array<i64: 512, 2>}]} {
    %c0 = arith.constant 0 : index
    %c0_0 = arith.constant 0 : index
    %0 = vector.load %arg2[%c0, %c0_0] : memref<2x64xf32, #tpu.memory_space<vmem>>, vector<2x64xf32>
    %c0_1 = arith.constant 0 : index
    %c0_2 = arith.constant 0 : index
    %1 = vector.load %arg3[%c0_1, %c0_2] : memref<1x64xf32, #tpu.memory_space<vmem>>, vector<1x64xf32>
    %c0_3 = arith.constant 0 : index
    %c0_4 = arith.constant 0 : index
    %2 = vector.load %arg4[%c0_3, %c0_4] : memref<64x64xf32, #tpu.memory_space<vmem>>, vector<64x64xf32>
    %c0_5 = arith.constant 0 : index
    %c0_6 = arith.constant 0 : index
    %3 = vector.load %arg5[%c0_5, %c0_6] : memref<1x64xf32, #tpu.memory_space<vmem>>, vector<1x64xf32>
    %c0_7 = arith.constant 0 : index
    %c0_8 = arith.constant 0 : index
    %4 = vector.load %arg6[%c0_7, %c0_8] : memref<64x2xf32, #tpu.memory_space<vmem>>, vector<64x2xf32>
    %c0_9 = arith.constant 0 : index
    %c0_10 = arith.constant 0 : index
    %5 = vector.load %arg7[%c0_9, %c0_10] : memref<1x2xf32, #tpu.memory_space<vmem>>, vector<1x2xf32>
    %c0_i32 = arith.constant 0 : i32
    %c128_i32 = arith.constant 128 : i32
    %6 = arith.muli %c0_i32, %c128_i32 : i32
    %7 = tpu.assume_multiple %6, 128 : i32
    %8 = arith.index_cast %7 : i32 to index
    %c0_11 = arith.constant 0 : index
    %9 = vector.load %arg1[%8, %c0_11] : memref<512x2xf32, #tpu.memory_space<vmem>>, vector<128x2xf32>
    %10 = vector.extract_strided_slice %9 {offsets = [0, 0], sizes = [128, 1], strides = [1, 1]} : vector<128x2xf32> to vector<128x1xf32>
    %11 = vector.extract_strided_slice %0 {offsets = [0, 0], sizes = [1, 64], strides = [1, 1]} : vector<2x64xf32> to vector<1x64xf32>
    %12 = vector.broadcast %10 : vector<128x1xf32> to vector<128x64xf32>
    %13 = vector.broadcast %11 : vector<1x64xf32> to vector<128x64xf32>
    %14 = arith.mulf %12, %13 : vector<128x64xf32>
    %15 = vector.broadcast %1 : vector<1x64xf32> to vector<128x64xf32>
    %16 = arith.addf %15, %14 : vector<128x64xf32>
    %17 = vector.extract_strided_slice %9 {offsets = [0, 1], sizes = [128, 1], strides = [1, 1]} : vector<128x2xf32> to vector<128x1xf32>
    %18 = vector.extract_strided_slice %0 {offsets = [1, 0], sizes = [1, 64], strides = [1, 1]} : vector<2x64xf32> to vector<1x64xf32>
    %19 = vector.broadcast %17 : vector<128x1xf32> to vector<128x64xf32>
    %20 = vector.broadcast %18 : vector<1x64xf32> to vector<128x64xf32>
    %21 = arith.mulf %19, %20 : vector<128x64xf32>
    %22 = arith.addf %16, %21 : vector<128x64xf32>
    %cst = arith.constant 0.000000e+00 : f32
    %23 = vector.broadcast %cst : f32 to vector<128x64xf32>
    %24 = arith.maximumf %22, %23 : vector<128x64xf32>
    %cst_12 = arith.constant dense<0.000000e+00> : vector<128x64xf32>
    %25 = tpu.matmul %24, %2, %cst_12 {dimension_numbers = #tpu.dot_dimension_numbers<[1], [0], [0], [1], [0, 0, 1, 1], [], []>} : vector<128x64xf32>, vector<64x64xf32>, vector<128x64xf32> -> vector<128x64xf32>
    %26 = vector.broadcast %3 : vector<1x64xf32> to vector<128x64xf32>
    %27 = arith.addf %25, %26 : vector<128x64xf32>
    %cst_13 = arith.constant 0.000000e+00 : f32
    %28 = vector.broadcast %cst_13 : f32 to vector<128x64xf32>
    %29 = arith.maximumf %27, %28 : vector<128x64xf32>
    %cst_14 = arith.constant dense<0.000000e+00> : vector<128x2xf32>
    %30 = tpu.matmul %29, %4, %cst_14 {dimension_numbers = #tpu.dot_dimension_numbers<[1], [0], [0], [1], [0, 0, 1, 1], [], []>} : vector<128x64xf32>, vector<64x2xf32>, vector<128x2xf32> -> vector<128x2xf32>
    %31 = vector.broadcast %5 : vector<1x2xf32> to vector<128x2xf32>
    %32 = arith.addf %30, %31 : vector<128x2xf32>
    %33 = arith.index_cast %7 : i32 to index
    %c0_15 = arith.constant 0 : index
    %34 = vector.load %arg8[%33, %c0_15] : memref<512x2xf32, #tpu.memory_space<vmem>>, vector<128x2xf32>
    tpu.vector_store %arg8[%33, %c0_15], %32 {strides = array<i32>} : memref<512x2xf32, #tpu.memory_space<vmem>>, vector<128x2xf32>,
    %c1_i32 = arith.constant 1 : i32
    %c128_i32_16 = arith.constant 128 : i32
    %35 = arith.muli %c1_i32, %c128_i32_16 : i32
    %36 = tpu.assume_multiple %35, 128 : i32
    %37 = arith.index_cast %36 : i32 to index
    %c0_17 = arith.constant 0 : index
    %38 = vector.load %arg1[%37, %c0_17] : memref<512x2xf32, #tpu.memory_space<vmem>>, vector<128x2xf32>
    %39 = vector.extract_strided_slice %38 {offsets = [0, 0], sizes = [128, 1], strides = [1, 1]} : vector<128x2xf32> to vector<128x1xf32>
    %40 = vector.extract_strided_slice %0 {offsets = [0, 0], sizes = [1, 64], strides = [1, 1]} : vector<2x64xf32> to vector<1x64xf32>
    %41 = vector.broadcast %39 : vector<128x1xf32> to vector<128x64xf32>
    %42 = vector.broadcast %40 : vector<1x64xf32> to vector<128x64xf32>
    %43 = arith.mulf %41, %42 : vector<128x64xf32>
    %44 = vector.broadcast %1 : vector<1x64xf32> to vector<128x64xf32>
    %45 = arith.addf %44, %43 : vector<128x64xf32>
    %46 = vector.extract_strided_slice %38 {offsets = [0, 1], sizes = [128, 1], strides = [1, 1]} : vector<128x2xf32> to vector<128x1xf32>
    %47 = vector.extract_strided_slice %0 {offsets = [1, 0], sizes = [1, 64], strides = [1, 1]} : vector<2x64xf32> to vector<1x64xf32>
    %48 = vector.broadcast %46 : vector<128x1xf32> to vector<128x64xf32>
    %49 = vector.broadcast %47 : vector<1x64xf32> to vector<128x64xf32>
    %50 = arith.mulf %48, %49 : vector<128x64xf32>
    %51 = arith.addf %45, %50 : vector<128x64xf32>
    %cst_18 = arith.constant 0.000000e+00 : f32
    %52 = vector.broadcast %cst_18 : f32 to vector<128x64xf32>
    %53 = arith.maximumf %51, %52 : vector<128x64xf32>
    %cst_19 = arith.constant dense<0.000000e+00> : vector<128x64xf32>
    %54 = tpu.matmul %53, %2, %cst_19 {dimension_numbers = #tpu.dot_dimension_numbers<[1], [0], [0], [1], [0, 0, 1, 1], [], []>} : vector<128x64xf32>, vector<64x64xf32>, vector<128x64xf32> -> vector<128x64xf32>
    %55 = vector.broadcast %3 : vector<1x64xf32> to vector<128x64xf32>
    %56 = arith.addf %54, %55 : vector<128x64xf32>
    %cst_20 = arith.constant 0.000000e+00 : f32
    %57 = vector.broadcast %cst_20 : f32 to vector<128x64xf32>
    %58 = arith.maximumf %56, %57 : vector<128x64xf32>
    %cst_21 = arith.constant dense<0.000000e+00> : vector<128x2xf32>
    %59 = tpu.matmul %58, %4, %cst_21 {dimension_numbers = #tpu.dot_dimension_numbers<[1], [0], [0], [1], [0, 0, 1, 1], [], []>} : vector<128x64xf32>, vector<64x2xf32>, vector<128x2xf32> -> vector<128x2xf32>
    %60 = vector.broadcast %5 : vector<1x2xf32> to vector<128x2xf32>
    %61 = arith.addf %59, %60 : vector<128x2xf32>
    %62 = arith.index_cast %36 : i32 to index
    %c0_22 = arith.constant 0 : index
    %63 = vector.load %arg8[%62, %c0_22] : memref<512x2xf32, #tpu.memory_space<vmem>>, vector<128x2xf32>
    tpu.vector_store %arg8[%62, %c0_22], %61 {strides = array<i32>} : memref<512x2xf32, #tpu.memory_space<vmem>>, vector<128x2xf32>,
    %c2_i32 = arith.constant 2 : i32
    %c128_i32_23 = arith.constant 128 : i32
    %64 = arith.muli %c2_i32, %c128_i32_23 : i32
    %65 = tpu.assume_multiple %64, 128 : i32
    %66 = arith.index_cast %65 : i32 to index
    %c0_24 = arith.constant 0 : index
    %67 = vector.load %arg1[%66, %c0_24] : memref<512x2xf32, #tpu.memory_space<vmem>>, vector<128x2xf32>
    %68 = vector.extract_strided_slice %67 {offsets = [0, 0], sizes = [128, 1], strides = [1, 1]} : vector<128x2xf32> to vector<128x1xf32>
    %69 = vector.extract_strided_slice %0 {offsets = [0, 0], sizes = [1, 64], strides = [1, 1]} : vector<2x64xf32> to vector<1x64xf32>
    %70 = vector.broadcast %68 : vector<128x1xf32> to vector<128x64xf32>
    %71 = vector.broadcast %69 : vector<1x64xf32> to vector<128x64xf32>
    %72 = arith.mulf %70, %71 : vector<128x64xf32>
    %73 = vector.broadcast %1 : vector<1x64xf32> to vector<128x64xf32>
    %74 = arith.addf %73, %72 : vector<128x64xf32>
    %75 = vector.extract_strided_slice %67 {offsets = [0, 1], sizes = [128, 1], strides = [1, 1]} : vector<128x2xf32> to vector<128x1xf32>
    %76 = vector.extract_strided_slice %0 {offsets = [1, 0], sizes = [1, 64], strides = [1, 1]} : vector<2x64xf32> to vector<1x64xf32>
    %77 = vector.broadcast %75 : vector<128x1xf32> to vector<128x64xf32>
    %78 = vector.broadcast %76 : vector<1x64xf32> to vector<128x64xf32>
    %79 = arith.mulf %77, %78 : vector<128x64xf32>
    %80 = arith.addf %74, %79 : vector<128x64xf32>
    %cst_25 = arith.constant 0.000000e+00 : f32
    %81 = vector.broadcast %cst_25 : f32 to vector<128x64xf32>
    %82 = arith.maximumf %80, %81 : vector<128x64xf32>
    %cst_26 = arith.constant dense<0.000000e+00> : vector<128x64xf32>
    %83 = tpu.matmul %82, %2, %cst_26 {dimension_numbers = #tpu.dot_dimension_numbers<[1], [0], [0], [1], [0, 0, 1, 1], [], []>} : vector<128x64xf32>, vector<64x64xf32>, vector<128x64xf32> -> vector<128x64xf32>
    %84 = vector.broadcast %3 : vector<1x64xf32> to vector<128x64xf32>
    %85 = arith.addf %83, %84 : vector<128x64xf32>
    %cst_27 = arith.constant 0.000000e+00 : f32
    %86 = vector.broadcast %cst_27 : f32 to vector<128x64xf32>
    %87 = arith.maximumf %85, %86 : vector<128x64xf32>
    %cst_28 = arith.constant dense<0.000000e+00> : vector<128x2xf32>
    %88 = tpu.matmul %87, %4, %cst_28 {dimension_numbers = #tpu.dot_dimension_numbers<[1], [0], [0], [1], [0, 0, 1, 1], [], []>} : vector<128x64xf32>, vector<64x2xf32>, vector<128x2xf32> -> vector<128x2xf32>
    %89 = vector.broadcast %5 : vector<1x2xf32> to vector<128x2xf32>
    %90 = arith.addf %88, %89 : vector<128x2xf32>
    %91 = arith.index_cast %65 : i32 to index
    %c0_29 = arith.constant 0 : index
    %92 = vector.load %arg8[%91, %c0_29] : memref<512x2xf32, #tpu.memory_space<vmem>>, vector<128x2xf32>
    tpu.vector_store %arg8[%91, %c0_29], %90 {strides = array<i32>} : memref<512x2xf32, #tpu.memory_space<vmem>>, vector<128x2xf32>,
    %c3_i32 = arith.constant 3 : i32
    %c128_i32_30 = arith.constant 128 : i32
    %93 = arith.muli %c3_i32, %c128_i32_30 : i32
    %94 = tpu.assume_multiple %93, 128 : i32
    %95 = arith.index_cast %94 : i32 to index
    %c0_31 = arith.constant 0 : index
    %96 = vector.load %arg1[%95, %c0_31] : memref<512x2xf32, #tpu.memory_space<vmem>>, vector<128x2xf32>
    %97 = vector.extract_strided_slice %96 {offsets = [0, 0], sizes = [128, 1], strides = [1, 1]} : vector<128x2xf32> to vector<128x1xf32>
    %98 = vector.extract_strided_slice %0 {offsets = [0, 0], sizes = [1, 64], strides = [1, 1]} : vector<2x64xf32> to vector<1x64xf32>
    %99 = vector.broadcast %97 : vector<128x1xf32> to vector<128x64xf32>
    %100 = vector.broadcast %98 : vector<1x64xf32> to vector<128x64xf32>
    %101 = arith.mulf %99, %100 : vector<128x64xf32>
    %102 = vector.broadcast %1 : vector<1x64xf32> to vector<128x64xf32>
    %103 = arith.addf %102, %101 : vector<128x64xf32>
    %104 = vector.extract_strided_slice %96 {offsets = [0, 1], sizes = [128, 1], strides = [1, 1]} : vector<128x2xf32> to vector<128x1xf32>
    %105 = vector.extract_strided_slice %0 {offsets = [1, 0], sizes = [1, 64], strides = [1, 1]} : vector<2x64xf32> to vector<1x64xf32>
    %106 = vector.broadcast %104 : vector<128x1xf32> to vector<128x64xf32>
    %107 = vector.broadcast %105 : vector<1x64xf32> to vector<128x64xf32>
    %108 = arith.mulf %106, %107 : vector<128x64xf32>
    %109 = arith.addf %103, %108 : vector<128x64xf32>
    %cst_32 = arith.constant 0.000000e+00 : f32
    %110 = vector.broadcast %cst_32 : f32 to vector<128x64xf32>
    %111 = arith.maximumf %109, %110 : vector<128x64xf32>
    %cst_33 = arith.constant dense<0.000000e+00> : vector<128x64xf32>
    %112 = tpu.matmul %111, %2, %cst_33 {dimension_numbers = #tpu.dot_dimension_numbers<[1], [0], [0], [1], [0, 0, 1, 1], [], []>} : vector<128x64xf32>, vector<64x64xf32>, vector<128x64xf32> -> vector<128x64xf32>
    %113 = vector.broadcast %3 : vector<1x64xf32> to vector<128x64xf32>
    %114 = arith.addf %112, %113 : vector<128x64xf32>
    %cst_34 = arith.constant 0.000000e+00 : f32
    %115 = vector.broadcast %cst_34 : f32 to vector<128x64xf32>
    %116 = arith.maximumf %114, %115 : vector<128x64xf32>
    %cst_35 = arith.constant dense<0.000000e+00> : vector<128x2xf32>
    %117 = tpu.matmul %116, %4, %cst_35 {dimension_numbers = #tpu.dot_dimension_numbers<[1], [0], [0], [1], [0, 0, 1, 1], [], []>} : vector<128x64xf32>, vector<64x2xf32>, vector<128x2xf32> -> vector<128x2xf32>
    %118 = vector.broadcast %5 : vector<1x2xf32> to vector<128x2xf32>
    %119 = arith.addf %117, %118 : vector<128x2xf32>
    %120 = arith.index_cast %94 : i32 to index
    %c0_36 = arith.constant 0 : index
    %121 = vector.load %arg8[%120, %c0_36] : memref<512x2xf32, #tpu.memory_space<vmem>>, vector<128x2xf32>
    tpu.vector_store %arg8[%120, %c0_36], %119 {strides = array<i32>} : memref<512x2xf32, #tpu.memory_space<vmem>>, vector<128x2xf32>,
    %c4_i32 = arith.constant 4 : i32
    return
  }
  func.func @transform_0(%arg0: i32) -> (i32, i32) {
    %c0_i32 = arith.constant 0 : i32
    %c0_i32_0 = arith.constant 0 : i32
    return %arg0, %c0_i32 : i32, i32
  }
  func.func @transform_1(%arg0: i32) -> (i32, i32) {
    %c0_i32 = arith.constant 0 : i32
    %c0_i32_0 = arith.constant 0 : i32
    %c0_i32_1 = arith.constant 0 : i32
    return %c0_i32, %c0_i32_0 : i32, i32
  }
  func.func @transform_2(%arg0: i32) -> (i32, i32) {
    %c0_i32 = arith.constant 0 : i32
    %c0_i32_0 = arith.constant 0 : i32
    %c0_i32_1 = arith.constant 0 : i32
    return %c0_i32, %c0_i32_0 : i32, i32
  }
  func.func @transform_3(%arg0: i32) -> (i32, i32) {
    %c0_i32 = arith.constant 0 : i32
    %c0_i32_0 = arith.constant 0 : i32
    %c0_i32_1 = arith.constant 0 : i32
    return %c0_i32, %c0_i32_0 : i32, i32
  }
  func.func @transform_4(%arg0: i32) -> (i32, i32) {
    %c0_i32 = arith.constant 0 : i32
    %c0_i32_0 = arith.constant 0 : i32
    %c0_i32_1 = arith.constant 0 : i32
    return %c0_i32, %c0_i32_0 : i32, i32
  }
  func.func @transform_5(%arg0: i32) -> (i32, i32) {
    %c0_i32 = arith.constant 0 : i32
    %c0_i32_0 = arith.constant 0 : i32
    %c0_i32_1 = arith.constant 0 : i32
    return %c0_i32, %c0_i32_0 : i32, i32
  }
  func.func @transform_6(%arg0: i32) -> (i32, i32) {
    %c0_i32 = arith.constant 0 : i32
    %c0_i32_0 = arith.constant 0 : i32
    %c0_i32_1 = arith.constant 0 : i32
    return %c0_i32, %c0_i32_0 : i32, i32
  }
  func.func @transform_7(%arg0: i32) -> (i32, i32) {
    %c0_i32 = arith.constant 0 : i32
    %c0_i32_0 = arith.constant 0 : i32
    return %arg0, %c0_i32 : i32, i32
  }
}

</mosaic_0001>

<llo_original>
// kernel: _aux_forward_impl.1
$region0: #{_aux_forward_impl.1}
  #allocation0 [shape = 'u32[]', space=smem, size = 0x4, offset = 0x4, fixed_abs, tag = 'smem constant byte address 0x4 - core index']
  #allocation1 [shape = 'u32[72,128]{1,0:T(1,128)}', space=vmem, size = 0x9000, scoped, tag = 'internal scratch']
  %s0 = inlined_call_operand.vmem [shape: f32[1024,2], index: 0, kind: input, shape index: {}]
  %s1 = inlined_call_operand.vmem [shape: f32[2,64], index: 1, kind: input, shape index: {}]
  %s2 = inlined_call_operand.vmem [shape: f32[1,64], index: 2, kind: input, shape index: {}]
  %s3 = inlined_call_operand.vmem [shape: f32[64,64], index: 3, kind: input, shape index: {}]
  %s4 = inlined_call_operand.vmem [shape: f32[1,64], index: 4, kind: input, shape index: {}]
  %s5 = inlined_call_operand.vmem [shape: f32[64,2], index: 5, kind: input, shape index: {}]
  %s6 = inlined_call_operand.vmem [shape: f32[1,2], index: 6, kind: input, shape index: {}]
  %s7 = inlined_call_operand.vmem [shape: f32[1024,2], index: 7, kind: output, shape index: {}]
  %s8 = sld [smem:[#allocation0]]
  $region61: #{_aux_forward_impl.1} parent=0
    _
  %s10 = ssub.s32 1, %s8
  %s11 = scalar_select 0, %s10, %s8
  loop: start=0, step=1, limit=4
  $region2: #{_aux_forward_impl.1} parent=0 // loop_pre_header
    _
  $region3: #{_aux_forward_impl.1} parent=0 // loop_header
    %s13 = sphi 0, %s17
    %p14 = scmp.ge.s32.totalorder %s13, 4
    %s23 = sphi 0, %s25
    %s26 = sphi 0, %s23
    %s27 = sphi 0, %s26
    %s43 = sphi 0, %s27
    %s47 = sphi 0, %s47
    %s49 = sphi 0, %s47
    %s50 = sphi 0, %s49
    %s64 = sphi 0, %s50
    %s68 = sphi 0, %s68
    %s70 = sphi 0, %s68
    %s71 = sphi 0, %s70
    %s85 = sphi 0, %s71
    %s89 = sphi 0, %s89
    %s91 = sphi 0, %s89
    %s92 = sphi 0, %s91
    %s106 = sphi 0, %s92
    %s110 = sphi 0, %s110
    %s112 = sphi 0, %s110
    %s113 = sphi 0, %s112
    %s127 = sphi 0, %s113
    %s131 = sphi 0, %s131
    %s133 = sphi 0, %s131
    %s134 = sphi 0, %s133
    %s148 = sphi 0, %s134
    %s152 = sphi 0, %s152
    %s154 = sphi 0, %s152
    %s155 = sphi 0, %s154
    %s169 = sphi 0, %s155
    %s175 = sphi 0, %s177
    %s178 = sphi 0, %s175
    %s179 = sphi 0, %s178
    %s195 = sphi 0, %s179
  $region4: #{_aux_forward_impl.1} parent=0 // loop_header_branch
    %16 = sbr.rel (%p14) target = $region8
  $region5: #{_aux_forward_impl.1} parent=0 // loop_body
    %s18 = ssub.s32 %s13, 1
    %s19 = ssub.s32 %s13, 2
    %s20 = sadd.s32 %s13, 1
    %s21 = ssub.s32 %s13, %s20
    %p22 = scmp.eq.s32.totalorder %s21, 0
    %s24 = sadd.s32 %s23, 1
    %s25 = scalar_select %p22, %s23, %s24
    %p28 = pneg %p22
    %p29 = scmp.eq.s32.totalorder %s13, 1
    %p30 = por %p28, %p29
    %p31 = scmp.ne.s32.totalorder %s23, %s26
    %p32 = scmp.eq.s32.totalorder %s13, 0
    %p33 = por %p31, %p32
    %p34 = scmp.ne.s32.totalorder %s23, %s26
    %p35 = scmp.eq.s32.totalorder %s18, 1
    %p36 = por %p34, %p35
    %p37 = scmp.ne.s32.totalorder %s26, %s27
    %p38 = scmp.eq.s32.totalorder %s18, 0
    %p39 = por %p37, %p38
    %p40 = scmp.ne.s32.totalorder %s26, %s27
    %p41 = scmp.eq.s32.totalorder %s19, 1
    %p42 = por %p40, %p41
    %p44 = scmp.ne.s32.totalorder %s27, %s43
    %p45 = scmp.eq.s32.totalorder %s19, 0
    %p46 = por %p44, %p45
    %s48 = sadd.s32 %s47, 1
    %p51 = scmp.eq.s32.totalorder %s13, 1
    %p52 = scmp.ne.s32.totalorder %s47, %s49
    %p53 = scmp.eq.s32.totalorder %s13, 0
    %p54 = por %p52, %p53
    %p55 = scmp.ne.s32.totalorder %s47, %s49
    %p56 = scmp.eq.s32.totalorder %s18, 1
    %p57 = por %p55, %p56
    %p58 = scmp.ne.s32.totalorder %s49, %s50
    %p59 = scmp.eq.s32.totalorder %s18, 0
    %p60 = por %p58, %p59
    %p61 = scmp.ne.s32.totalorder %s49, %s50
    %p62 = scmp.eq.s32.totalorder %s19, 1
    %p63 = por %p61, %p62
    %p65 = scmp.ne.s32.totalorder %s50, %s64
    %p66 = scmp.eq.s32.totalorder %s19, 0
    %p67 = por %p65, %p66
    %s69 = sadd.s32 %s68, 1
    %p72 = scmp.eq.s32.totalorder %s13, 1
    %p73 = scmp.ne.s32.totalorder %s68, %s70
    %p74 = scmp.eq.s32.totalorder %s13, 0
    %p75 = por %p73, %p74
    %p76 = scmp.ne.s32.totalorder %s68, %s70
    %p77 = scmp.eq.s32.totalorder %s18, 1
    %p78 = por %p76, %p77
    %p79 = scmp.ne.s32.totalorder %s70, %s71
    %p80 = scmp.eq.s32.totalorder %s18, 0
    %p81 = por %p79, %p80
    %p82 = scmp.ne.s32.totalorder %s70, %s71
    %p83 = scmp.eq.s32.totalorder %s19, 1
    %p84 = por %p82, %p83
    %p86 = scmp.ne.s32.totalorder %s71, %s85
    %p87 = scmp.eq.s32.totalorder %s19, 0
    %p88 = por %p86, %p87
    %s90 = sadd.s32 %s89, 1
    %p93 = scmp.eq.s32.totalorder %s13, 1
    %p94 = scmp.ne.s32.totalorder %s89, %s91
    %p95 = scmp.eq.s32.totalorder %s13, 0
    %p96 = por %p94, %p95
    %p97 = scmp.ne.s32.totalorder %s89, %s91
    %p98 = scmp.eq.s32.totalorder %s18, 1
    %p99 = por %p97, %p98
    %p100 = scmp.ne.s32.totalorder %s91, %s92
    %p101 = scmp.eq.s32.totalorder %s18, 0
    %p102 = por %p100, %p101
    %p103 = scmp.ne.s32.totalorder %s91, %s92
    %p104 = scmp.eq.s32.totalorder %s19, 1
    %p105 = por %p103, %p104
    %p107 = scmp.ne.s32.totalorder %s92, %s106
    %p108 = scmp.eq.s32.totalorder %s19, 0
    %p109 = por %p107, %p108
    %s111 = sadd.s32 %s110, 1
    %p114 = scmp.eq.s32.totalorder %s13, 1
    %p115 = scmp.ne.s32.totalorder %s110, %s112
    %p116 = scmp.eq.s32.totalorder %s13, 0
    %p117 = por %p115, %p116
    %p118 = scmp.ne.s32.totalorder %s110, %s112
    %p119 = scmp.eq.s32.totalorder %s18, 1
    %p120 = por %p118, %p119
    %p121 = scmp.ne.s32.totalorder %s112, %s113
    %p122 = scmp.eq.s32.totalorder %s18, 0
    %p123 = por %p121, %p122
    %p124 = scmp.ne.s32.totalorder %s112, %s113
    %p125 = scmp.eq.s32.totalorder %s19, 1
    %p126 = por %p124, %p125
    %p128 = scmp.ne.s32.totalorder %s113, %s127
    %p129 = scmp.eq.s32.totalorder %s19, 0
    %p130 = por %p128, %p129
    %s132 = sadd.s32 %s131, 1
    %p135 = scmp.eq.s32.totalorder %s13, 1
    %p136 = scmp.ne.s32.totalorder %s131, %s133
    %p137 = scmp.eq.s32.totalorder %s13, 0
    %p138 = por %p136, %p137
    %p139 = scmp.ne.s32.totalorder %s131, %s133
    %p140 = scmp.eq.s32.totalorder %s18, 1
    %p141 = por %p139, %p140
    %p142 = scmp.ne.s32.totalorder %s133, %s134
    %p143 = scmp.eq.s32.totalorder %s18, 0
    %p144 = por %p142, %p143
    %p145 = scmp.ne.s32.totalorder %s133, %s134
    %p146 = scmp.eq.s32.totalorder %s19, 1
    %p147 = por %p145, %p146
    %p149 = scmp.ne.s32.totalorder %s134, %s148
    %p150 = scmp.eq.s32.totalorder %s19, 0
    %p151 = por %p149, %p150
    %s153 = sadd.s32 %s152, 1
    %p156 = scmp.eq.s32.totalorder %s13, 1
    %p157 = scmp.ne.s32.totalorder %s152, %s154
    %p158 = scmp.eq.s32.totalorder %s13, 0
    %p159 = por %p157, %p158
    %p160 = scmp.ne.s32.totalorder %s152, %s154
    %p161 = scmp.eq.s32.totalorder %s18, 1
    %p162 = por %p160, %p161
    %p163 = scmp.ne.s32.totalorder %s154, %s155
    %p164 = scmp.eq.s32.totalorder %s18, 0
    %p165 = por %p163, %p164
    %p166 = scmp.ne.s32.totalorder %s154, %s155
    %p167 = scmp.eq.s32.totalorder %s19, 1
    %p168 = por %p166, %p167
    %p170 = scmp.ne.s32.totalorder %s155, %s169
    %p171 = scmp.eq.s32.totalorder %s19, 0
    %p172 = por %p170, %p171
    %s173 = ssub.s32 %s13, %s20
    %p174 = scmp.eq.s32.totalorder %s173, 0
    %s176 = sadd.s32 %s175, 1
    %s177 = scalar_select %p174, %s175, %s176
    %p180 = pneg %p174
    %p181 = scmp.eq.s32.totalorder %s13, 1
    %p182 = por %p180, %p181
    %p183 = scmp.ne.s32.totalorder %s175, %s178
    %p184 = scmp.eq.s32.totalorder %s13, 0
    %p185 = por %p183, %p184
    %p186 = scmp.ne.s32.totalorder %s175, %s178
    %p187 = scmp.eq.s32.totalorder %s18, 1
    %p188 = por %p186, %p187
    %p189 = scmp.ne.s32.totalorder %s178, %s179
    %p190 = scmp.eq.s32.totalorder %s18, 0
    %p191 = por %p189, %p190
    %p192 = scmp.ne.s32.totalorder %s178, %s179
    %p193 = scmp.eq.s32.totalorder %s19, 1
    %p194 = por %p192, %p193
    %p196 = scmp.ne.s32.totalorder %s179, %s195
    %p197 = scmp.eq.s32.totalorder %s19, 0
    %p198 = por %p196, %p197
    %p199 = scmp.le.s32.totalorder 1, %s13
    %p200 = scmp.lt.s32.totalorder %s13, 3
    %p201 = pnand %p199, %p200
    %p202 = pneg %p201
    // Predicated region
    $region9: #{_aux_forward_impl.1} parent=5 // pred_check
      _
    $region10: #{_aux_forward_impl.1} parent=5 // pred_check_branch
      %204 = sbr.rel (%p201) target = $region12
    $region11: #{_aux_forward_impl.1} parent=5 // pred_region
      %s205 = ssub.s32 %s13, 1
      // Predicated region
      $region13: #{_aux_forward_impl.1} parent=11 // pred_check
        %p206 = pneg %p60
      $region14: #{_aux_forward_impl.1} parent=11 // pred_check_branch
        %208 = sbr.rel (%p206) target = $region16
      $region15: #{_aux_forward_impl.1} parent=11 // pred_region
        _
      $region16: #{_aux_forward_impl.1} parent=11 // pred_fallthru
        _
      // Predicated region
      $region17: #{_aux_forward_impl.1} parent=11 // pred_check
        %p209 = pneg %p81
      $region18: #{_aux_forward_impl.1} parent=11 // pred_check_branch
        %211 = sbr.rel (%p209) target = $region20
      $region19: #{_aux_forward_impl.1} parent=11 // pred_region
        _
      $region20: #{_aux_forward_impl.1} parent=11 // pred_fallthru
        _
      // Predicated region
      $region21: #{_aux_forward_impl.1} parent=11 // pred_check
        %p212 = pneg %p102
      $region22: #{_aux_forward_impl.1} parent=11 // pred_check_branch
        %214 = sbr.rel (%p212) target = $region24
      $region23: #{_aux_forward_impl.1} parent=11 // pred_region
        _
      $region24: #{_aux_forward_impl.1} parent=11 // pred_fallthru
        _
      // Predicated region
      $region25: #{_aux_forward_impl.1} parent=11 // pred_check
        %p215 = pneg %p123
      $region26: #{_aux_forward_impl.1} parent=11 // pred_check_branch
        %217 = sbr.rel (%p215) target = $region28
      $region27: #{_aux_forward_impl.1} parent=11 // pred_region
        _
      $region28: #{_aux_forward_impl.1} parent=11 // pred_fallthru
        _
      // Predicated region
      $region29: #{_aux_forward_impl.1} parent=11 // pred_check
        %p218 = pneg %p144
      $region30: #{_aux_forward_impl.1} parent=11 // pred_check_branch
        %220 = sbr.rel (%p218) target = $region32
      $region31: #{_aux_forward_impl.1} parent=11 // pred_region
        _
      $region32: #{_aux_forward_impl.1} parent=11 // pred_fallthru
        _
      // Predicated region
      $region33: #{_aux_forward_impl.1} parent=11 // pred_check
        %p221 = pneg %p165
      $region34: #{_aux_forward_impl.1} parent=11 // pred_check_branch
        %223 = sbr.rel (%p221) target = $region36
      $region35: #{_aux_forward_impl.1} parent=11 // pred_region
        _
      $region36: #{_aux_forward_impl.1} parent=11 // pred_fallthru
        _
    $region12: #{_aux_forward_impl.1} parent=5 // pred_fallthru
      _
    %p224 = scmp.lt.s32.totalorder %s13, 2
    // Predicated region
    $region37: #{_aux_forward_impl.1} parent=5 // pred_check
      %p225 = pneg %p224
    $region38: #{_aux_forward_impl.1} parent=5 // pred_check_branch
      %227 = sbr.rel (%p225) target = $region40
    $region39: #{_aux_forward_impl.1} parent=5 // pred_region
      // Predicated region
      $region41: #{_aux_forward_impl.1} parent=39 // pred_check
        %p228 = pneg %p33
      $region42: #{_aux_forward_impl.1} parent=39 // pred_check_branch
        %230 = sbr.rel (%p228) target = $region44
      $region43: #{_aux_forward_impl.1} parent=39 // pred_region
        %s231 = smul.u32 64, %s13
        %p232 = scmp.lt.s32.totalorder %s231, 127
        %s233 = scalar_select %p232, %s231, 127
        %s234 = smul.addr %s233, 8
        %s235 = scalar_lea.vmem %s0, %s234
        %s236 = smul.u32 64, %s13
      $region44: #{_aux_forward_impl.1} parent=39 // pred_fallthru
        _
    $region40: #{_aux_forward_impl.1} parent=5 // pred_fallthru
      _
    %p237 = scmp.le.s32.totalorder 1, %s13
    %p238 = scmp.lt.s32.totalorder %s13, 3
    %p239 = pnand %p237, %p238
    %p240 = pneg %p239
    // Predicated region
    $region45: #{_aux_forward_impl.1} parent=5 // pred_check
      _
    $region46: #{_aux_forward_impl.1} parent=5 // pred_check_branch
      %242 = sbr.rel (%p239) target = $region48
    $region47: #{_aux_forward_impl.1} parent=5 // pred_region
      %s243 = ssub.s32 %s13, 1
      %s244 = smul.u32 64, %s18
      %p245 = scmp.lt.s32.totalorder %s244, 127
      %s246 = scalar_select %p245, %s244, 127
      %s247 = smul.addr %s246, 8
      %s248 = scalar_lea.vmem %s0, %s247
      %p249 = pneg %p39
      %p250 = pneg %p36
      %p251 = pneg %p60
      %p252 = pneg %p57
      %p253 = pneg %p81
      %p254 = pneg %p78
      %p255 = pneg %p102
      %p256 = pneg %p99
      %p257 = pneg %p123
      %p258 = pneg %p120
      %p259 = pneg %p144
      %p260 = pneg %p141
      %p261 = pneg %p165
      %p262 = pneg %p162
      %p263 = pneg %p191
      %p264 = pneg %p188
      %s265 = smul.u32 64, %s18
      %p266 = scmp.lt.s32.totalorder %s265, 127
      %s267 = scalar_select %p266, %s265, 127
      %s268 = smul.addr %s267, 8
      %s269 = scalar_lea.vmem %s7, %s268
      %s270 = smul.u32 64, %s18
      %p271 = scmp.lt.s32.totalorder %s270, 127
      %s272 = scalar_select %p271, %s270, 127
      %s273 = smul.addr %s272, 8
      %s274 = scalar_lea.vmem %s0, %s273
      %s275 = smul.u32 64, %s18
      %s276 = smul.u32 64, %s18
      %p277 = scmp.lt.s32.totalorder %s276, 127
      %s278 = scalar_select %p277, %s276, 127
      %s279 = smul.addr %s278, 8
      %s280 = scalar_lea.vmem %s7, %s279
      %s281 = smul.u32 64, %s18
      %v282 = vld [vmem:[%s1] sm:$0x3]
      %v283 = vld [vmem:[%s2] sm:$0x1]
      %v284 = vld [vmem:[%s3] sm:$0xff]
      %v285 = vld [vmem:[%s3 + $0x8] sm:$0xff]
      %v286 = vld [vmem:[%s3 + $0x10] sm:$0xff]
      %v287 = vld [vmem:[%s3 + $0x18] sm:$0xff]
      %v288 = vld [vmem:[%s3 + $0x20] sm:$0xff]
      %v289 = vld [vmem:[%s3 + $0x28] sm:$0xff]
      %v290 = vld [vmem:[%s3 + $0x30] sm:$0xff]
      %v291 = vld [vmem:[%s3 + $0x38] sm:$0xff]
      %v292 = vld [vmem:[%s4] sm:$0x1]
      %v293 = vld [vmem:[%s5] sm:$0xff]
      %v294 = vld [vmem:[%s5 + $0x8] sm:$0xff]
      %v295 = vld [vmem:[%s5 + $0x10] sm:$0xff]
      %v296 = vld [vmem:[%s5 + $0x18] sm:$0xff]
      %v297 = vld [vmem:[%s5 + $0x20] sm:$0xff]
      %v298 = vld [vmem:[%s5 + $0x28] sm:$0xff]
      %v299 = vld [vmem:[%s5 + $0x30] sm:$0xff]
      %v300 = vld [vmem:[%s5 + $0x38] sm:$0xff]
      %v301 = vld [vmem:[%s6] sm:$0x1]
      %v302 = vld [vmem:[%s274] sm:$0xff]
      %v303 = vld [vmem:[%s274 + $0x8] sm:$0xff]
      %v304 = vld [vmem:[%s274 + $0x10] sm:$0xff]
      %v305 = vld [vmem:[%s274 + $0x18] sm:$0xff]
      %v306 = vld [vmem:[%s274 + $0x20] sm:$0xff]
      %v307 = vld [vmem:[%s274 + $0x28] sm:$0xff]
      %v308 = vld [vmem:[%s274 + $0x30] sm:$0xff]
      %v309 = vld [vmem:[%s274 + $0x38] sm:$0xff]
      %v310 = vld [vmem:[%s274 + $0x40] sm:$0xff]
      %v311 = vld [vmem:[%s274 + $0x48] sm:$0xff]
      %v312 = vld [vmem:[%s274 + $0x50] sm:$0xff]
      %v313 = vld [vmem:[%s274 + $0x58] sm:$0xff]
      %v314 = vld [vmem:[%s274 + $0x60] sm:$0xff]
      %v315 = vld [vmem:[%s274 + $0x68] sm:$0xff]
      %v316 = vld [vmem:[%s274 + $0x70] sm:$0xff]
      %v317 = vld [vmem:[%s274 + $0x78] sm:$0xff]
      %319 = vset.pattern.permute.xlu0 0
      %320 = vperm.xlu0 %319, %v302
      %v321 = vpop.permute.xlu0 %320
      %324 = vset.pattern.permute.xlu0 0
      %325 = vperm.xlu0 %324, %v303
      %v326 = vpop.permute.xlu0 %325
      %329 = vset.pattern.permute.xlu0 0
      %330 = vperm.xlu0 %329, %v304
      %v331 = vpop.permute.xlu0 %330
      %334 = vset.pattern.permute.xlu0 0
      %335 = vperm.xlu0 %334, %v305
      %v336 = vpop.permute.xlu0 %335
      %339 = vset.pattern.permute.xlu0 0
      %340 = vperm.xlu0 %339, %v306
      %v341 = vpop.permute.xlu0 %340
      %344 = vset.pattern.permute.xlu0 0
      %345 = vperm.xlu0 %344, %v307
      %v346 = vpop.permute.xlu0 %345
      %349 = vset.pattern.permute.xlu0 0
      %350 = vperm.xlu0 %349, %v308
      %v351 = vpop.permute.xlu0 %350
      %354 = vset.pattern.permute.xlu0 0
      %355 = vperm.xlu0 %354, %v309
      %v356 = vpop.permute.xlu0 %355
      %359 = vset.pattern.permute.xlu0 0
      %360 = vperm.xlu0 %359, %v310
      %v361 = vpop.permute.xlu0 %360
      %364 = vset.pattern.permute.xlu0 0
      %365 = vperm.xlu0 %364, %v311
      %v366 = vpop.permute.xlu0 %365
      %369 = vset.pattern.permute.xlu0 0
      %370 = vperm.xlu0 %369, %v312
      %v371 = vpop.permute.xlu0 %370
      %374 = vset.pattern.permute.xlu0 0
      %375 = vperm.xlu0 %374, %v313
      %v376 = vpop.permute.xlu0 %375
      %379 = vset.pattern.permute.xlu0 0
      %380 = vperm.xlu0 %379, %v314
      %v381 = vpop.permute.xlu0 %380
      %384 = vset.pattern.permute.xlu0 0
      %385 = vperm.xlu0 %384, %v315
      %v386 = vpop.permute.xlu0 %385
      %389 = vset.pattern.permute.xlu0 0
      %390 = vperm.xlu0 %389, %v316
      %v391 = vpop.permute.xlu0 %390
      %394 = vset.pattern.permute.xlu0 0
      %395 = vperm.xlu0 %394, %v317
      %v396 = vpop.permute.xlu0 %395
      %v398 = vperm.slane %v282, 0
      %v399 = vmul.f32 %v321, %v398
      %v400 = vmul.f32 %v326, %v398
      %v401 = vmul.f32 %v331, %v398
      %v402 = vmul.f32 %v336, %v398
      %v403 = vmul.f32 %v341, %v398
      %v404 = vmul.f32 %v346, %v398
      %v405 = vmul.f32 %v351, %v398
      %v406 = vmul.f32 %v356, %v398
      %v407 = vmul.f32 %v361, %v398
      %v408 = vmul.f32 %v366, %v398
      %v409 = vmul.f32 %v371, %v398
      %v410 = vmul.f32 %v376, %v398
      %v411 = vmul.f32 %v381, %v398
      %v412 = vmul.f32 %v386, %v398
      %v413 = vmul.f32 %v391, %v398
      %v414 = vmul.f32 %v396, %v398
      %v416 = vperm.slane %v283, 0
      %v418 = vadd.f32 %v416, %v399
      %v419 = vadd.f32 %v416, %v400
      %v420 = vadd.f32 %v416, %v401
      %v421 = vadd.f32 %v416, %v402
      %v422 = vadd.f32 %v416, %v403
      %v423 = vadd.f32 %v416, %v404
      %v424 = vadd.f32 %v416, %v405
      %v425 = vadd.f32 %v416, %v406
      %v426 = vadd.f32 %v416, %v407
      %v427 = vadd.f32 %v416, %v408
      %v428 = vadd.f32 %v416, %v409
      %v429 = vadd.f32 %v416, %v410
      %v430 = vadd.f32 %v416, %v411
      %v431 = vadd.f32 %v416, %v412
      %v432 = vadd.f32 %v416, %v413
      %v433 = vadd.f32 %v416, %v414
      %434 = vset.pattern.permute.xlu0 1
      %435 = vperm.xlu0 %434, %v302
      %v436 = vpop.permute.xlu0 %435
      %438 = vset.pattern.permute.xlu0 1
      %439 = vperm.xlu0 %438, %v303
      %v440 = vpop.permute.xlu0 %439
      %442 = vset.pattern.permute.xlu0 1
      %443 = vperm.xlu0 %442, %v304
      %v444 = vpop.permute.xlu0 %443
      %446 = vset.pattern.permute.xlu0 1
      %447 = vperm.xlu0 %446, %v305
      %v448 = vpop.permute.xlu0 %447
      %450 = vset.pattern.permute.xlu0 1
      %451 = vperm.xlu0 %450, %v306
      %v452 = vpop.permute.xlu0 %451
      %454 = vset.pattern.permute.xlu0 1
      %455 = vperm.xlu0 %454, %v307
      %v456 = vpop.permute.xlu0 %455
      %458 = vset.pattern.permute.xlu0 1
      %459 = vperm.xlu0 %458, %v308
      %v460 = vpop.permute.xlu0 %459
      %462 = vset.pattern.permute.xlu0 1
      %463 = vperm.xlu0 %462, %v309
      %v464 = vpop.permute.xlu0 %463
      %466 = vset.pattern.permute.xlu0 1
      %467 = vperm.xlu0 %466, %v310
      %v468 = vpop.permute.xlu0 %467
      %470 = vset.pattern.permute.xlu0 1
      %471 = vperm.xlu0 %470, %v311
      %v472 = vpop.permute.xlu0 %471
      %474 = vset.pattern.permute.xlu0 1
      %475 = vperm.xlu0 %474, %v312
      %v476 = vpop.permute.xlu0 %475
      %478 = vset.pattern.permute.xlu0 1
      %479 = vperm.xlu0 %478, %v313
      %v480 = vpop.permute.xlu0 %479
      %482 = vset.pattern.permute.xlu0 1
      %483 = vperm.xlu0 %482, %v314
      %v484 = vpop.permute.xlu0 %483
      %486 = vset.pattern.permute.xlu0 1
      %487 = vperm.xlu0 %486, %v315
      %v488 = vpop.permute.xlu0 %487
      %490 = vset.pattern.permute.xlu0 1
      %491 = vperm.xlu0 %490, %v316
      %v492 = vpop.permute.xlu0 %491
      %494 = vset.pattern.permute.xlu0 1
      %495 = vperm.xlu0 %494, %v317
      %v496 = vpop.permute.xlu0 %495
      %v498 = vperm.slane %v282, 1
      %v499 = vmul.f32 %v436, %v498
      %v500 = vmul.f32 %v440, %v498
      %v501 = vmul.f32 %v444, %v498
      %v502 = vmul.f32 %v448, %v498
      %v503 = vmul.f32 %v452, %v498
      %v504 = vmul.f32 %v456, %v498
      %v505 = vmul.f32 %v460, %v498
      %v506 = vmul.f32 %v464, %v498
      %v507 = vmul.f32 %v468, %v498
      %v508 = vmul.f32 %v472, %v498
      %v509 = vmul.f32 %v476, %v498
      %v510 = vmul.f32 %v480, %v498
      %v511 = vmul.f32 %v484, %v498
      %v512 = vmul.f32 %v488, %v498
      %v513 = vmul.f32 %v492, %v498
      %v514 = vmul.f32 %v496, %v498
      %v515 = vadd.f32 %v418, %v499
      %v516 = vadd.f32 %v419, %v500
      %v517 = vadd.f32 %v420, %v501
      %v518 = vadd.f32 %v421, %v502
      %v519 = vadd.f32 %v422, %v503
      %v520 = vadd.f32 %v423, %v504
      %v521 = vadd.f32 %v424, %v505
      %v522 = vadd.f32 %v425, %v506
      %v523 = vadd.f32 %v426, %v507
      %v524 = vadd.f32 %v427, %v508
      %v525 = vadd.f32 %v428, %v509
      %v526 = vadd.f32 %v429, %v510
      %v527 = vadd.f32 %v430, %v511
      %v528 = vadd.f32 %v431, %v512
      %v529 = vadd.f32 %v432, %v513
      %v530 = vadd.f32 %v433, %v514
      %v531 = vmax.f32 %v515, 0.0
      %v532 = vmax.f32 %v516, 0.0
      %v533 = vmax.f32 %v517, 0.0
      %v534 = vmax.f32 %v518, 0.0
      %v535 = vmax.f32 %v519, 0.0
      %v536 = vmax.f32 %v520, 0.0
      %v537 = vmax.f32 %v521, 0.0
      %v538 = vmax.f32 %v522, 0.0
      %v539 = vmax.f32 %v523, 0.0
      %v540 = vmax.f32 %v524, 0.0
      %v541 = vmax.f32 %v525, 0.0
      %v542 = vmax.f32 %v526, 0.0
      %v543 = vmax.f32 %v527, 0.0
      %v544 = vmax.f32 %v528, 0.0
      %v545 = vmax.f32 %v529, 0.0
      %v546 = vmax.f32 %v530, 0.0
      %v548 = vperm.slane %v292, 0
      %vm550 = vcmask 523264
      %v552 = vsel %vm550, %v531, 0
      %v555 = vsel %vm550, %v532, 0
      %v558 = vsel %vm550, %v533, 0
      %v561 = vsel %vm550, %v534, 0
      %v564 = vsel %vm550, %v535, 0
      %v567 = vsel %vm550, %v536, 0
      %v570 = vsel %vm550, %v537, 0
      %v573 = vsel %vm550, %v538, 0
      %v576 = vsel %vm550, %v539, 0
      %v579 = vsel %vm550, %v540, 0
      %v582 = vsel %vm550, %v541, 0
      %v585 = vsel %vm550, %v542, 0
      %v588 = vsel %vm550, %v543, 0
      %v591 = vsel %vm550, %v544, 0
      %v594 = vsel %vm550, %v545, 0
      %v597 = vsel %vm550, %v546, 0
      %599 = vmatpush.msra.mxu0 0.0
      %600 = vmatpush.msra.mxu0 0.0
      %601 = vmatpush.msra.mxu0 0.0
      %602 = vmatpush.msra.mxu0 0.0
      %603 = vmatpush.msra.mxu0 0.0
      %604 = vmatpush.msra.mxu0 0.0
      %605 = vmatpush.msra.mxu0 0.0
      %606 = vmatpush.msra.mxu0 0.0
      %607 = vmatpush.msra.mxu0 %v291
      %608 = vmatpush.msra.mxu0 %v290
      %609 = vmatpush.msra.mxu0 %v289
      %610 = vmatpush.msra.mxu0 %v288
      %611 = vmatpush.msra.mxu0 %v287
      %612 = vmatpush.msra.mxu0 %v286
      %613 = vmatpush.msra.mxu0 %v285
      %614 = vmatpush.msra.mxu0 %v284
      %615 = vmatmul.f32.gmra.mxu0 %v552
      %v616 = vpop.f32.mrf.mxu0
      %v617 = vadd.f32 %v548, %v616
      %618 = vmatmul.f32.gmra.mxu0 %v555
      %v619 = vpop.f32.mrf.mxu0
      %v620 = vadd.f32 %v548, %v619
      %621 = vmatmul.f32.gmra.mxu0 %v558
      %v622 = vpop.f32.mrf.mxu0
      %v623 = vadd.f32 %v548, %v622
      %624 = vmatmul.f32.gmra.mxu0 %v561
      %v625 = vpop.f32.mrf.mxu0
      %v626 = vadd.f32 %v548, %v625
      %627 = vmatmul.f32.gmra.mxu0 %v564
      %v628 = vpop.f32.mrf.mxu0
      %v629 = vadd.f32 %v548, %v628
      %630 = vmatmul.f32.gmra.mxu0 %v567
      %v631 = vpop.f32.mrf.mxu0
      %v632 = vadd.f32 %v548, %v631
      %633 = vmatmul.f32.gmra.mxu0 %v570
      %v634 = vpop.f32.mrf.mxu0
      %v635 = vadd.f32 %v548, %v634
      %636 = vmatmul.f32.gmra.mxu0 %v573
      %v637 = vpop.f32.mrf.mxu0
      %v638 = vadd.f32 %v548, %v637
      %639 = vmatmul.f32.gmra.mxu0 %v576
      %v640 = vpop.f32.mrf.mxu0
      %v641 = vadd.f32 %v548, %v640
      %642 = vmatmul.f32.gmra.mxu0 %v579
      %v643 = vpop.f32.mrf.mxu0
      %v644 = vadd.f32 %v548, %v643
      %645 = vmatmul.f32.gmra.mxu0 %v582
      %v646 = vpop.f32.mrf.mxu0
      %v647 = vadd.f32 %v548, %v646
      %648 = vmatmul.f32.gmra.mxu0 %v585
      %v649 = vpop.f32.mrf.mxu0
      %v650 = vadd.f32 %v548, %v649
      %651 = vmatmul.f32.gmra.mxu0 %v588
      %v652 = vpop.f32.mrf.mxu0
      %v653 = vadd.f32 %v548, %v652
      %654 = vmatmul.f32.gmra.mxu0 %v591
      %v655 = vpop.f32.mrf.mxu0
      %v656 = vadd.f32 %v548, %v655
      %657 = vmatmul.f32.gmra.mxu0 %v594
      %v658 = vpop.f32.mrf.mxu0
      %v659 = vadd.f32 %v548, %v658
      %660 = vmatmul.f32.gmra.mxu0 %v597
      %v661 = vpop.f32.mrf.mxu0
      %v662 = vadd.f32 %v548, %v661
      %663 = vdwg.mxu0
      %v664 = vmax.f32 %v617, 0.0
      %v665 = vmax.f32 %v620, 0.0
      %v666 = vmax.f32 %v623, 0.0
      %v667 = vmax.f32 %v626, 0.0
      %v668 = vmax.f32 %v629, 0.0
      %v669 = vmax.f32 %v632, 0.0
      %v670 = vmax.f32 %v635, 0.0
      %v671 = vmax.f32 %v638, 0.0
      %v672 = vmax.f32 %v641, 0.0
      %v673 = vmax.f32 %v644, 0.0
      %v674 = vmax.f32 %v647, 0.0
      %v675 = vmax.f32 %v650, 0.0
      %v676 = vmax.f32 %v653, 0.0
      %v677 = vmax.f32 %v656, 0.0
      %v678 = vmax.f32 %v659, 0.0
      %v679 = vmax.f32 %v662, 0.0
      %v681 = vperm.slane %v301, 0
      %v684 = vsel %vm550, %v664, 0
      %v687 = vsel %vm550, %v665, 0
      %v690 = vsel %vm550, %v666, 0
      %v693 = vsel %vm550, %v667, 0
      %v696 = vsel %vm550, %v668, 0
      %v699 = vsel %vm550, %v669, 0
      %v702 = vsel %vm550, %v670, 0
      %v705 = vsel %vm550, %v671, 0
      %v708 = vsel %vm550, %v672, 0
      %v711 = vsel %vm550, %v673, 0
      %v714 = vsel %vm550, %v674, 0
      %v717 = vsel %vm550, %v675, 0
      %v720 = vsel %vm550, %v676, 0
      %v723 = vsel %vm550, %v677, 0
      %v726 = vsel %vm550, %v678, 0
      %v729 = vsel %vm550, %v679, 0
      %731 = vmatpush.msra.mxu0 0.0
      %732 = vmatpush.msra.mxu0 0.0
      %733 = vmatpush.msra.mxu0 0.0
      %734 = vmatpush.msra.mxu0 0.0
      %735 = vmatpush.msra.mxu0 0.0
      %736 = vmatpush.msra.mxu0 0.0
      %737 = vmatpush.msra.mxu0 0.0
      %738 = vmatpush.msra.mxu0 0.0
      %739 = vmatpush.msra.mxu0 %v300
      %740 = vmatpush.msra.mxu0 %v299
      %741 = vmatpush.msra.mxu0 %v298
      %742 = vmatpush.msra.mxu0 %v297
      %743 = vmatpush.msra.mxu0 %v296
      %744 = vmatpush.msra.mxu0 %v295
      %745 = vmatpush.msra.mxu0 %v294
      %746 = vmatpush.msra.mxu0 %v293
      %747 = vmatmul.f32.gmra.mxu0 %v684
      %v748 = vpop.f32.mrf.mxu0
      %v749 = vadd.f32 %v681, %v748
      %750 = vmatmul.f32.gmra.mxu0 %v687
      %v751 = vpop.f32.mrf.mxu0
      %v752 = vadd.f32 %v681, %v751
      %753 = vmatmul.f32.gmra.mxu0 %v690
      %v754 = vpop.f32.mrf.mxu0
      %v755 = vadd.f32 %v681, %v754
      %756 = vmatmul.f32.gmra.mxu0 %v693
      %v757 = vpop.f32.mrf.mxu0
      %v758 = vadd.f32 %v681, %v757
      %759 = vmatmul.f32.gmra.mxu0 %v696
      %v760 = vpop.f32.mrf.mxu0
      %v761 = vadd.f32 %v681, %v760
      %762 = vmatmul.f32.gmra.mxu0 %v699
      %v763 = vpop.f32.mrf.mxu0
      %v764 = vadd.f32 %v681, %v763
      %765 = vmatmul.f32.gmra.mxu0 %v702
      %v766 = vpop.f32.mrf.mxu0
      %v767 = vadd.f32 %v681, %v766
      %768 = vmatmul.f32.gmra.mxu0 %v705
      %v769 = vpop.f32.mrf.mxu0
      %v770 = vadd.f32 %v681, %v769
      %771 = vmatmul.f32.gmra.mxu0 %v708
      %v772 = vpop.f32.mrf.mxu0
      %v773 = vadd.f32 %v681, %v772
      %774 = vmatmul.f32.gmra.mxu0 %v711
      %v775 = vpop.f32.mrf.mxu0
      %v776 = vadd.f32 %v681, %v775
      %777 = vmatmul.f32.gmra.mxu0 %v714
      %v778 = vpop.f32.mrf.mxu0
      %v779 = vadd.f32 %v681, %v778
      %780 = vmatmul.f32.gmra.mxu0 %v717
      %v781 = vpop.f32.mrf.mxu0
      %v782 = vadd.f32 %v681, %v781
      %783 = vmatmul.f32.gmra.mxu0 %v720
      %v784 = vpop.f32.mrf.mxu0
      %v785 = vadd.f32 %v681, %v784
      %786 = vmatmul.f32.gmra.mxu0 %v723
      %v787 = vpop.f32.mrf.mxu0
      %v788 = vadd.f32 %v681, %v787
      %789 = vmatmul.f32.gmra.mxu0 %v726
      %v790 = vpop.f32.mrf.mxu0
      %v791 = vadd.f32 %v681, %v790
      %792 = vmatmul.f32.gmra.mxu0 %v729
      %v793 = vpop.f32.mrf.mxu0
      %v794 = vadd.f32 %v681, %v793
      %795 = vdwg.mxu0
      %vm796 = vcmask 15360
      %797 = vst.msk [vmem:[%s280] sm:$0xff] %vm796, %v749
      %798 = vst.msk [vmem:[%s280 + $0x8] sm:$0xff] %vm796, %v752
      %799 = vst.msk [vmem:[%s280 + $0x10] sm:$0xff] %vm796, %v755
      %800 = vst.msk [vmem:[%s280 + $0x18] sm:$0xff] %vm796, %v758
      %801 = vst.msk [vmem:[%s280 + $0x20] sm:$0xff] %vm796, %v761
      %802 = vst.msk [vmem:[%s280 + $0x28] sm:$0xff] %vm796, %v764
      %803 = vst.msk [vmem:[%s280 + $0x30] sm:$0xff] %vm796, %v767
      %804 = vst.msk [vmem:[%s280 + $0x38] sm:$0xff] %vm796, %v770
      %805 = vst.msk [vmem:[%s280 + $0x40] sm:$0xff] %vm796, %v773
      %806 = vst.msk [vmem:[%s280 + $0x48] sm:$0xff] %vm796, %v776
      %807 = vst.msk [vmem:[%s280 + $0x50] sm:$0xff] %vm796, %v779
      %808 = vst.msk [vmem:[%s280 + $0x58] sm:$0xff] %vm796, %v782
      %809 = vst.msk [vmem:[%s280 + $0x60] sm:$0xff] %vm796, %v785
      %810 = vst.msk [vmem:[%s280 + $0x68] sm:$0xff] %vm796, %v788
      %811 = vst.msk [vmem:[%s280 + $0x70] sm:$0xff] %vm796, %v791
      %812 = vst.msk [vmem:[%s280 + $0x78] sm:$0xff] %vm796, %v794
      %s813 = scalar_lea.vmem %s274, 128
      %v814 = vld [vmem:[%s813] sm:$0xff]
      %v815 = vld [vmem:[%s813 + $0x8] sm:$0xff]
      %v816 = vld [vmem:[%s813 + $0x10] sm:$0xff]
      %v817 = vld [vmem:[%s813 + $0x18] sm:$0xff]
      %v818 = vld [vmem:[%s813 + $0x20] sm:$0xff]
      %v819 = vld [vmem:[%s813 + $0x28] sm:$0xff]
      %v820 = vld [vmem:[%s813 + $0x30] sm:$0xff]
      %v821 = vld [vmem:[%s813 + $0x38] sm:$0xff]
      %v822 = vld [vmem:[%s813 + $0x40] sm:$0xff]
      %v823 = vld [vmem:[%s813 + $0x48] sm:$0xff]
      %v824 = vld [vmem:[%s813 + $0x50] sm:$0xff]
      %v825 = vld [vmem:[%s813 + $0x58] sm:$0xff]
      %v826 = vld [vmem:[%s813 + $0x60] sm:$0xff]
      %v827 = vld [vmem:[%s813 + $0x68] sm:$0xff]
      %v828 = vld [vmem:[%s813 + $0x70] sm:$0xff]
      %v829 = vld [vmem:[%s813 + $0x78] sm:$0xff]
      %831 = vset.pattern.permute.xlu0 0
      %832 = vperm.xlu0 %831, %v814
      %v833 = vpop.permute.xlu0 %832
      %836 = vset.pattern.permute.xlu0 0
      %837 = vperm.xlu0 %836, %v815
      %v838 = vpop.permute.xlu0 %837
      %841 = vset.pattern.permute.xlu0 0
      %842 = vperm.xlu0 %841, %v816
      %v843 = vpop.permute.xlu0 %842
      %846 = vset.pattern.permute.xlu0 0
      %847 = vperm.xlu0 %846, %v817
      %v848 = vpop.permute.xlu0 %847
      %851 = vset.pattern.permute.xlu0 0
      %852 = vperm.xlu0 %851, %v818
      %v853 = vpop.permute.xlu0 %852
      %856 = vset.pattern.permute.xlu0 0
      %857 = vperm.xlu0 %856, %v819
      %v858 = vpop.permute.xlu0 %857
      %861 = vset.pattern.permute.xlu0 0
      %862 = vperm.xlu0 %861, %v820
      %v863 = vpop.permute.xlu0 %862
      %866 = vset.pattern.permute.xlu0 0
      %867 = vperm.xlu0 %866, %v821
      %v868 = vpop.permute.xlu0 %867
      %871 = vset.pattern.permute.xlu0 0
      %872 = vperm.xlu0 %871, %v822
      %v873 = vpop.permute.xlu0 %872
      %876 = vset.pattern.permute.xlu0 0
      %877 = vperm.xlu0 %876, %v823
      %v878 = vpop.permute.xlu0 %877
      %881 = vset.pattern.permute.xlu0 0
      %882 = vperm.xlu0 %881, %v824
      %v883 = vpop.permute.xlu0 %882
      %886 = vset.pattern.permute.xlu0 0
      %887 = vperm.xlu0 %886, %v825
      %v888 = vpop.permute.xlu0 %887
      %891 = vset.pattern.permute.xlu0 0
      %892 = vperm.xlu0 %891, %v826
      %v893 = vpop.permute.xlu0 %892
      %896 = vset.pattern.permute.xlu0 0
      %897 = vperm.xlu0 %896, %v827
      %v898 = vpop.permute.xlu0 %897
      %901 = vset.pattern.permute.xlu0 0
      %902 = vperm.xlu0 %901, %v828
      %v903 = vpop.permute.xlu0 %902
      %906 = vset.pattern.permute.xlu0 0
      %907 = vperm.xlu0 %906, %v829
      %v908 = vpop.permute.xlu0 %907
      %v910 = vmul.f32 %v833, %v398
      %v911 = vmul.f32 %v838, %v398
      %v912 = vmul.f32 %v843, %v398
      %v913 = vmul.f32 %v848, %v398
      %v914 = vmul.f32 %v853, %v398
      %v915 = vmul.f32 %v858, %v398
      %v916 = vmul.f32 %v863, %v398
      %v917 = vmul.f32 %v868, %v398
      %v918 = vmul.f32 %v873, %v398
      %v919 = vmul.f32 %v878, %v398
      %v920 = vmul.f32 %v883, %v398
      %v921 = vmul.f32 %v888, %v398
      %v922 = vmul.f32 %v893, %v398
      %v923 = vmul.f32 %v898, %v398
      %v924 = vmul.f32 %v903, %v398
      %v925 = vmul.f32 %v908, %v398
      %v926 = vadd.f32 %v416, %v910
      %v927 = vadd.f32 %v416, %v911
      %v928 = vadd.f32 %v416, %v912
      %v929 = vadd.f32 %v416, %v913
      %v930 = vadd.f32 %v416, %v914
      %v931 = vadd.f32 %v416, %v915
      %v932 = vadd.f32 %v416, %v916
      %v933 = vadd.f32 %v416, %v917
      %v934 = vadd.f32 %v416, %v918
      %v935 = vadd.f32 %v416, %v919
      %v936 = vadd.f32 %v416, %v920
      %v937 = vadd.f32 %v416, %v921
      %v938 = vadd.f32 %v416, %v922
      %v939 = vadd.f32 %v416, %v923
      %v940 = vadd.f32 %v416, %v924
      %v941 = vadd.f32 %v416, %v925
      %942 = vset.pattern.permute.xlu0 1
      %943 = vperm.xlu0 %942, %v814
      %v944 = vpop.permute.xlu0 %943
      %946 = vset.pattern.permute.xlu0 1
      %947 = vperm.xlu0 %946, %v815
      %v948 = vpop.permute.xlu0 %947
      %950 = vset.pattern.permute.xlu0 1
      %951 = vperm.xlu0 %950, %v816
      %v952 = vpop.permute.xlu0 %951
      %954 = vset.pattern.permute.xlu0 1
      %955 = vperm.xlu0 %954, %v817
      %v956 = vpop.permute.xlu0 %955
      %958 = vset.pattern.permute.xlu0 1
      %959 = vperm.xlu0 %958, %v818
      %v960 = vpop.permute.xlu0 %959
      %962 = vset.pattern.permute.xlu0 1
      %963 = vperm.xlu0 %962, %v819
      %v964 = vpop.permute.xlu0 %963
      %966 = vset.pattern.permute.xlu0 1
      %967 = vperm.xlu0 %966, %v820
      %v968 = vpop.permute.xlu0 %967
      %970 = vset.pattern.permute.xlu0 1
      %971 = vperm.xlu0 %970, %v821
      %v972 = vpop.permute.xlu0 %971
      %974 = vset.pattern.permute.xlu0 1
      %975 = vperm.xlu0 %974, %v822
      %v976 = vpop.permute.xlu0 %975
      %978 = vset.pattern.permute.xlu0 1
      %979 = vperm.xlu0 %978, %v823
      %v980 = vpop.permute.xlu0 %979
      %982 = vset.pattern.permute.xlu0 1
      %983 = vperm.xlu0 %982, %v824
      %v984 = vpop.permute.xlu0 %983
      %986 = vset.pattern.permute.xlu0 1
      %987 = vperm.xlu0 %986, %v825
      %v988 = vpop.permute.xlu0 %987
      %990 = vset.pattern.permute.xlu0 1
      %991 = vperm.xlu0 %990, %v826
      %v992 = vpop.permute.xlu0 %991
      %994 = vset.pattern.permute.xlu0 1
      %995 = vperm.xlu0 %994, %v827
      %v996 = vpop.permute.xlu0 %995
      %998 = vset.pattern.permute.xlu0 1
      %999 = vperm.xlu0 %998, %v828
      %v1000 = vpop.permute.xlu0 %999
      %1002 = vset.pattern.permute.xlu0 1
      %1003 = vperm.xlu0 %1002, %v829
      %v1004 = vpop.permute.xlu0 %1003
      %v1006 = vmul.f32 %v944, %v498
      %v1007 = vmul.f32 %v948, %v498
      %v1008 = vmul.f32 %v952, %v498
      %v1009 = vmul.f32 %v956, %v498
      %v1010 = vmul.f32 %v960, %v498
      %v1011 = vmul.f32 %v964, %v498
      %v1012 = vmul.f32 %v968, %v498
      %v1013 = vmul.f32 %v972, %v498
      %v1014 = vmul.f32 %v976, %v498
      %v1015 = vmul.f32 %v980, %v498
      %v1016 = vmul.f32 %v984, %v498
      %v1017 = vmul.f32 %v988, %v498
      %v1018 = vmul.f32 %v992, %v498
      %v1019 = vmul.f32 %v996, %v498
      %v1020 = vmul.f32 %v1000, %v498
      %v1021 = vmul.f32 %v1004, %v498
      %v1022 = vadd.f32 %v926, %v1006
      %v1023 = vadd.f32 %v927, %v1007
      %v1024 = vadd.f32 %v928, %v1008
      %v1025 = vadd.f32 %v929, %v1009
      %v1026 = vadd.f32 %v930, %v1010
      %v1027 = vadd.f32 %v931, %v1011
      %v1028 = vadd.f32 %v932, %v1012
      %v1029 = vadd.f32 %v933, %v1013
      %v1030 = vadd.f32 %v934, %v1014
      %v1031 = vadd.f32 %v935, %v1015
      %v1032 = vadd.f32 %v936, %v1016
      %v1033 = vadd.f32 %v937, %v1017
      %v1034 = vadd.f32 %v938, %v1018
      %v1035 = vadd.f32 %v939, %v1019
      %v1036 = vadd.f32 %v940, %v1020
      %v1037 = vadd.f32 %v941, %v1021
      %v1038 = vmax.f32 %v1022, 0.0
      %v1039 = vmax.f32 %v1023, 0.0
      %v1040 = vmax.f32 %v1024, 0.0
      %v1041 = vmax.f32 %v1025, 0.0
      %v1042 = vmax.f32 %v1026, 0.0
      %v1043 = vmax.f32 %v1027, 0.0
      %v1044 = vmax.f32 %v1028, 0.0
      %v1045 = vmax.f32 %v1029, 0.0
      %v1046 = vmax.f32 %v1030, 0.0
      %v1047 = vmax.f32 %v1031, 0.0
      %v1048 = vmax.f32 %v1032, 0.0
      %v1049 = vmax.f32 %v1033, 0.0
      %v1050 = vmax.f32 %v1034, 0.0
      %v1051 = vmax.f32 %v1035, 0.0
      %v1052 = vmax.f32 %v1036, 0.0
      %v1053 = vmax.f32 %v1037, 0.0
      %v1055 = vsel %vm550, %v1038, 0
      %v1058 = vsel %vm550, %v1039, 0
      %v1061 = vsel %vm550, %v1040, 0
      %v1064 = vsel %vm550, %v1041, 0
      %v1067 = vsel %vm550, %v1042, 0
      %v1070 = vsel %vm550, %v1043, 0
      %v1073 = vsel %vm550, %v1044, 0
      %v1076 = vsel %vm550, %v1045, 0
      %v1079 = vsel %vm550, %v1046, 0
      %v1082 = vsel %vm550, %v1047, 0
      %v1085 = vsel %vm550, %v1048, 0
      %v1088 = vsel %vm550, %v1049, 0
      %v1091 = vsel %vm550, %v1050, 0
      %v1094 = vsel %vm550, %v1051, 0
      %v1097 = vsel %vm550, %v1052, 0
      %v1100 = vsel %vm550, %v1053, 0
      %1102 = vmatpush.msra.mxu0 0.0
      %1103 = vmatpush.msra.mxu0 0.0
      %1104 = vmatpush.msra.mxu0 0.0
      %1105 = vmatpush.msra.mxu0 0.0
      %1106 = vmatpush.msra.mxu0 0.0
      %1107 = vmatpush.msra.mxu0 0.0
      %1108 = vmatpush.msra.mxu0 0.0
      %1109 = vmatpush.msra.mxu0 0.0
      %1110 = vmatpush.msra.mxu0 %v291
      %1111 = vmatpush.msra.mxu0 %v290
      %1112 = vmatpush.msra.mxu0 %v289
      %1113 = vmatpush.msra.mxu0 %v288
      %1114 = vmatpush.msra.mxu0 %v287
      %1115 = vmatpush.msra.mxu0 %v286
      %1116 = vmatpush.msra.mxu0 %v285
      %1117 = vmatpush.msra.mxu0 %v284
      %1118 = vmatmul.f32.gmra.mxu0 %v1055
      %v1119 = vpop.f32.mrf.mxu0
      %v1120 = vadd.f32 %v548, %v1119
      %1121 = vmatmul.f32.gmra.mxu0 %v1058
      %v1122 = vpop.f32.mrf.mxu0
      %v1123 = vadd.f32 %v548, %v1122
      %1124 = vmatmul.f32.gmra.mxu0 %v1061
      %v1125 = vpop.f32.mrf.mxu0
      %v1126 = vadd.f32 %v548, %v1125
      %1127 = vmatmul.f32.gmra.mxu0 %v1064
      %v1128 = vpop.f32.mrf.mxu0
      %v1129 = vadd.f32 %v548, %v1128
      %1130 = vmatmul.f32.gmra.mxu0 %v1067
      %v1131 = vpop.f32.mrf.mxu0
      %v1132 = vadd.f32 %v548, %v1131
      %1133 = vmatmul.f32.gmra.mxu0 %v1070
      %v1134 = vpop.f32.mrf.mxu0
      %v1135 = vadd.f32 %v548, %v1134
      %1136 = vmatmul.f32.gmra.mxu0 %v1073
      %v1137 = vpop.f32.mrf.mxu0
      %v1138 = vadd.f32 %v548, %v1137
      %1139 = vmatmul.f32.gmra.mxu0 %v1076
      %v1140 = vpop.f32.mrf.mxu0
      %v1141 = vadd.f32 %v548, %v1140
      %1142 = vmatmul.f32.gmra.mxu0 %v1079
      %v1143 = vpop.f32.mrf.mxu0
      %v1144 = vadd.f32 %v548, %v1143
      %1145 = vmatmul.f32.gmra.mxu0 %v1082
      %v1146 = vpop.f32.mrf.mxu0
      %v1147 = vadd.f32 %v548, %v1146
      %1148 = vmatmul.f32.gmra.mxu0 %v1085
      %v1149 = vpop.f32.mrf.mxu0
      %v1150 = vadd.f32 %v548, %v1149
      %1151 = vmatmul.f32.gmra.mxu0 %v1088
      %v1152 = vpop.f32.mrf.mxu0
      %v1153 = vadd.f32 %v548, %v1152
      %1154 = vmatmul.f32.gmra.mxu0 %v1091
      %v1155 = vpop.f32.mrf.mxu0
      %v1156 = vadd.f32 %v548, %v1155
      %1157 = vmatmul.f32.gmra.mxu0 %v1094
      %v1158 = vpop.f32.mrf.mxu0
      %v1159 = vadd.f32 %v548, %v1158
      %1160 = vmatmul.f32.gmra.mxu0 %v1097
      %v1161 = vpop.f32.mrf.mxu0
      %v1162 = vadd.f32 %v548, %v1161
      %1163 = vmatmul.f32.gmra.mxu0 %v1100
      %v1164 = vpop.f32.mrf.mxu0
      %v1165 = vadd.f32 %v548, %v1164
      %1166 = vdwg.mxu0
      %v1167 = vmax.f32 %v1120, 0.0
      %v1168 = vmax.f32 %v1123, 0.0
      %v1169 = vmax.f32 %v1126, 0.0
      %v1170 = vmax.f32 %v1129, 0.0
      %v1171 = vmax.f32 %v1132, 0.0
      %v1172 = vmax.f32 %v1135, 0.0
      %v1173 = vmax.f32 %v1138, 0.0
      %v1174 = vmax.f32 %v1141, 0.0
      %v1175 = vmax.f32 %v1144, 0.0
      %v1176 = vmax.f32 %v1147, 0.0
      %v1177 = vmax.f32 %v1150, 0.0
      %v1178 = vmax.f32 %v1153, 0.0
      %v1179 = vmax.f32 %v1156, 0.0
      %v1180 = vmax.f32 %v1159, 0.0
      %v1181 = vmax.f32 %v1162, 0.0
      %v1182 = vmax.f32 %v1165, 0.0
      %v1184 = vsel %vm550, %v1167, 0
      %v1187 = vsel %vm550, %v1168, 0
      %v1190 = vsel %vm550, %v1169, 0
      %v1193 = vsel %vm550, %v1170, 0
      %v1196 = vsel %vm550, %v1171, 0
      %v1199 = vsel %vm550, %v1172, 0
      %v1202 = vsel %vm550, %v1173, 0
      %v1205 = vsel %vm550, %v1174, 0
      %v1208 = vsel %vm550, %v1175, 0
      %v1211 = vsel %vm550, %v1176, 0
      %v1214 = vsel %vm550, %v1177, 0
      %v1217 = vsel %vm550, %v1178, 0
      %v1220 = vsel %vm550, %v1179, 0
      %v1223 = vsel %vm550, %v1180, 0
      %v1226 = vsel %vm550, %v1181, 0
      %v1229 = vsel %vm550, %v1182, 0
      %1231 = vmatpush.msra.mxu0 0.0
      %1232 = vmatpush.msra.mxu0 0.0
      %1233 = vmatpush.msra.mxu0 0.0
      %1234 = vmatpush.msra.mxu0 0.0
      %1235 = vmatpush.msra.mxu0 0.0
      %1236 = vmatpush.msra.mxu0 0.0
      %1237 = vmatpush.msra.mxu0 0.0
      %1238 = vmatpush.msra.mxu0 0.0
      %1239 = vmatpush.msra.mxu0 %v300
      %1240 = vmatpush.msra.mxu0 %v299
      %1241 = vmatpush.msra.mxu0 %v298
      %1242 = vmatpush.msra.mxu0 %v297
      %1243 = vmatpush.msra.mxu0 %v296
      %1244 = vmatpush.msra.mxu0 %v295
      %1245 = vmatpush.msra.mxu0 %v294
      %1246 = vmatpush.msra.mxu0 %v293
      %1247 = vmatmul.f32.gmra.mxu0 %v1184
      %v1248 = vpop.f32.mrf.mxu0
      %v1249 = vadd.f32 %v681, %v1248
      %1250 = vmatmul.f32.gmra.mxu0 %v1187
      %v1251 = vpop.f32.mrf.mxu0
      %v1252 = vadd.f32 %v681, %v1251
      %1253 = vmatmul.f32.gmra.mxu0 %v1190
      %v1254 = vpop.f32.mrf.mxu0
      %v1255 = vadd.f32 %v681, %v1254
      %1256 = vmatmul.f32.gmra.mxu0 %v1193
      %v1257 = vpop.f32.mrf.mxu0
      %v1258 = vadd.f32 %v681, %v1257
      %1259 = vmatmul.f32.gmra.mxu0 %v1196
      %v1260 = vpop.f32.mrf.mxu0
      %v1261 = vadd.f32 %v681, %v1260
      %1262 = vmatmul.f32.gmra.mxu0 %v1199
      %v1263 = vpop.f32.mrf.mxu0
      %v1264 = vadd.f32 %v681, %v1263
      %1265 = vmatmul.f32.gmra.mxu0 %v1202
      %v1266 = vpop.f32.mrf.mxu0
      %v1267 = vadd.f32 %v681, %v1266
      %1268 = vmatmul.f32.gmra.mxu0 %v1205
      %v1269 = vpop.f32.mrf.mxu0
      %v1270 = vadd.f32 %v681, %v1269
      %1271 = vmatmul.f32.gmra.mxu0 %v1208
      %v1272 = vpop.f32.mrf.mxu0
      %v1273 = vadd.f32 %v681, %v1272
      %1274 = vmatmul.f32.gmra.mxu0 %v1211
      %v1275 = vpop.f32.mrf.mxu0
      %v1276 = vadd.f32 %v681, %v1275
      %1277 = vmatmul.f32.gmra.mxu0 %v1214
      %v1278 = vpop.f32.mrf.mxu0
      %v1279 = vadd.f32 %v681, %v1278
      %1280 = vmatmul.f32.gmra.mxu0 %v1217
      %v1281 = vpop.f32.mrf.mxu0
      %v1282 = vadd.f32 %v681, %v1281
      %1283 = vmatmul.f32.gmra.mxu0 %v1220
      %v1284 = vpop.f32.mrf.mxu0
      %v1285 = vadd.f32 %v681, %v1284
      %1286 = vmatmul.f32.gmra.mxu0 %v1223
      %v1287 = vpop.f32.mrf.mxu0
      %v1288 = vadd.f32 %v681, %v1287
      %1289 = vmatmul.f32.gmra.mxu0 %v1226
      %v1290 = vpop.f32.mrf.mxu0
      %v1291 = vadd.f32 %v681, %v1290
      %1292 = vmatmul.f32.gmra.mxu0 %v1229
      %v1293 = vpop.f32.mrf.mxu0
      %v1294 = vadd.f32 %v681, %v1293
      %1295 = vdwg.mxu0
      %s1296 = scalar_lea.vmem %s280, 128
      %1297 = vst.msk [vmem:[%s1296] sm:$0xff] %vm796, %v1249
      %1298 = vst.msk [vmem:[%s1296 + $0x8] sm:$0xff] %vm796, %v1252
      %1299 = vst.msk [vmem:[%s1296 + $0x10] sm:$0xff] %vm796, %v1255
      %1300 = vst.msk [vmem:[%s1296 + $0x18] sm:$0xff] %vm796, %v1258
      %1301 = vst.msk [vmem:[%s1296 + $0x20] sm:$0xff] %vm796, %v1261
      %1302 = vst.msk [vmem:[%s1296 + $0x28] sm:$0xff] %vm796, %v1264
      %1303 = vst.msk [vmem:[%s1296 + $0x30] sm:$0xff] %vm796, %v1267
      %1304 = vst.msk [vmem:[%s1296 + $0x38] sm:$0xff] %vm796, %v1270
      %1305 = vst.msk [vmem:[%s1296 + $0x40] sm:$0xff] %vm796, %v1273
      %1306 = vst.msk [vmem:[%s1296 + $0x48] sm:$0xff] %vm796, %v1276
      %1307 = vst.msk [vmem:[%s1296 + $0x50] sm:$0xff] %vm796, %v1279
      %1308 = vst.msk [vmem:[%s1296 + $0x58] sm:$0xff] %vm796, %v1282
      %1309 = vst.msk [vmem:[%s1296 + $0x60] sm:$0xff] %vm796, %v1285
      %1310 = vst.msk [vmem:[%s1296 + $0x68] sm:$0xff] %vm796, %v1288
      %1311 = vst.msk [vmem:[%s1296 + $0x70] sm:$0xff] %vm796, %v1291
      %1312 = vst.msk [vmem:[%s1296 + $0x78] sm:$0xff] %vm796, %v1294
      %s1313 = scalar_lea.vmem %s274, 256
      %v1314 = vld [vmem:[%s1313] sm:$0xff]
      %v1315 = vld [vmem:[%s1313 + $0x8] sm:$0xff]
      %v1316 = vld [vmem:[%s1313 + $0x10] sm:$0xff]
      %v1317 = vld [vmem:[%s1313 + $0x18] sm:$0xff]
      %v1318 = vld [vmem:[%s1313 + $0x20] sm:$0xff]
      %v1319 = vld [vmem:[%s1313 + $0x28] sm:$0xff]
      %v1320 = vld [vmem:[%s1313 + $0x30] sm:$0xff]
      %v1321 = vld [vmem:[%s1313 + $0x38] sm:$0xff]
      %v1322 = vld [vmem:[%s1313 + $0x40] sm:$0xff]
      %v1323 = vld [vmem:[%s1313 + $0x48] sm:$0xff]
      %v1324 = vld [vmem:[%s1313 + $0x50] sm:$0xff]
      %v1325 = vld [vmem:[%s1313 + $0x58] sm:$0xff]
      %v1326 = vld [vmem:[%s1313 + $0x60] sm:$0xff]
      %v1327 = vld [vmem:[%s1313 + $0x68] sm:$0xff]
      %v1328 = vld [vmem:[%s1313 + $0x70] sm:$0xff]
      %v1329 = vld [vmem:[%s1313 + $0x78] sm:$0xff]
      %1331 = vset.pattern.permute.xlu0 0
      %1332 = vperm.xlu0 %1331, %v1314
      %v1333 = vpop.permute.xlu0 %1332
      %1336 = vset.pattern.permute.xlu0 0
      %1337 = vperm.xlu0 %1336, %v1315
      %v1338 = vpop.permute.xlu0 %1337
      %1341 = vset.pattern.permute.xlu0 0
      %1342 = vperm.xlu0 %1341, %v1316
      %v1343 = vpop.permute.xlu0 %1342
      %1346 = vset.pattern.permute.xlu0 0
      %1347 = vperm.xlu0 %1346, %v1317
      %v1348 = vpop.permute.xlu0 %1347
      %1351 = vset.pattern.permute.xlu0 0
      %1352 = vperm.xlu0 %1351, %v1318
      %v1353 = vpop.permute.xlu0 %1352
      %1356 = vset.pattern.permute.xlu0 0
      %1357 = vperm.xlu0 %1356, %v1319
      %v1358 = vpop.permute.xlu0 %1357
      %1361 = vset.pattern.permute.xlu0 0
      %1362 = vperm.xlu0 %1361, %v1320
      %v1363 = vpop.permute.xlu0 %1362
      %1366 = vset.pattern.permute.xlu0 0
      %1367 = vperm.xlu0 %1366, %v1321
      %v1368 = vpop.permute.xlu0 %1367
      %1371 = vset.pattern.permute.xlu0 0
      %1372 = vperm.xlu0 %1371, %v1322
      %v1373 = vpop.permute.xlu0 %1372
      %1376 = vset.pattern.permute.xlu0 0
      %1377 = vperm.xlu0 %1376, %v1323
      %v1378 = vpop.permute.xlu0 %1377
      %1381 = vset.pattern.permute.xlu0 0
      %1382 = vperm.xlu0 %1381, %v1324
      %v1383 = vpop.permute.xlu0 %1382
      %1386 = vset.pattern.permute.xlu0 0
      %1387 = vperm.xlu0 %1386, %v1325
      %v1388 = vpop.permute.xlu0 %1387
      %1391 = vset.pattern.permute.xlu0 0
      %1392 = vperm.xlu0 %1391, %v1326
      %v1393 = vpop.permute.xlu0 %1392
      %1396 = vset.pattern.permute.xlu0 0
      %1397 = vperm.xlu0 %1396, %v1327
      %v1398 = vpop.permute.xlu0 %1397
      %1401 = vset.pattern.permute.xlu0 0
      %1402 = vperm.xlu0 %1401, %v1328
      %v1403 = vpop.permute.xlu0 %1402
      %1406 = vset.pattern.permute.xlu0 0
      %1407 = vperm.xlu0 %1406, %v1329
      %v1408 = vpop.permute.xlu0 %1407
      %v1410 = vmul.f32 %v1333, %v398
      %v1411 = vmul.f32 %v1338, %v398
      %v1412 = vmul.f32 %v1343, %v398
      %v1413 = vmul.f32 %v1348, %v398
      %v1414 = vmul.f32 %v1353, %v398
      %v1415 = vmul.f32 %v1358, %v398
      %v1416 = vmul.f32 %v1363, %v398
      %v1417 = vmul.f32 %v1368, %v398
      %v1418 = vmul.f32 %v1373, %v398
      %v1419 = vmul.f32 %v1378, %v398
      %v1420 = vmul.f32 %v1383, %v398
      %v1421 = vmul.f32 %v1388, %v398
      %v1422 = vmul.f32 %v1393, %v398
      %v1423 = vmul.f32 %v1398, %v398
      %v1424 = vmul.f32 %v1403, %v398
      %v1425 = vmul.f32 %v1408, %v398
      %v1426 = vadd.f32 %v416, %v1410
      %v1427 = vadd.f32 %v416, %v1411
      %v1428 = vadd.f32 %v416, %v1412
      %v1429 = vadd.f32 %v416, %v1413
      %v1430 = vadd.f32 %v416, %v1414
      %v1431 = vadd.f32 %v416, %v1415
      %v1432 = vadd.f32 %v416, %v1416
      %v1433 = vadd.f32 %v416, %v1417
      %v1434 = vadd.f32 %v416, %v1418
      %v1435 = vadd.f32 %v416, %v1419
      %v1436 = vadd.f32 %v416, %v1420
      %v1437 = vadd.f32 %v416, %v1421
      %v1438 = vadd.f32 %v416, %v1422
      %v1439 = vadd.f32 %v416, %v1423
      %v1440 = vadd.f32 %v416, %v1424
      %v1441 = vadd.f32 %v416, %v1425
      %1442 = vset.pattern.permute.xlu0 1
      %1443 = vperm.xlu0 %1442, %v1314
      %v1444 = vpop.permute.xlu0 %1443
      %1446 = vset.pattern.permute.xlu0 1
      %1447 = vperm.xlu0 %1446, %v1315
      %v1448 = vpop.permute.xlu0 %1447
      %1450 = vset.pattern.permute.xlu0 1
      %1451 = vperm.xlu0 %1450, %v1316
      %v1452 = vpop.permute.xlu0 %1451
      %1454 = vset.pattern.permute.xlu0 1
      %1455 = vperm.xlu0 %1454, %v1317
      %v1456 = vpop.permute.xlu0 %1455
      %1458 = vset.pattern.permute.xlu0 1
      %1459 = vperm.xlu0 %1458, %v1318
      %v1460 = vpop.permute.xlu0 %1459
      %1462 = vset.pattern.permute.xlu0 1
      %1463 = vperm.xlu0 %1462, %v1319
      %v1464 = vpop.permute.xlu0 %1463
      %1466 = vset.pattern.permute.xlu0 1
      %1467 = vperm.xlu0 %1466, %v1320
      %v1468 = vpop.permute.xlu0 %1467
      %1470 = vset.pattern.permute.xlu0 1
      %1471 = vperm.xlu0 %1470, %v1321
      %v1472 = vpop.permute.xlu0 %1471
      %1474 = vset.pattern.permute.xlu0 1
      %1475 = vperm.xlu0 %1474, %v1322
      %v1476 = vpop.permute.xlu0 %1475
      %1478 = vset.pattern.permute.xlu0 1
      %1479 = vperm.xlu0 %1478, %v1323
      %v1480 = vpop.permute.xlu0 %1479
      %1482 = vset.pattern.permute.xlu0 1
      %1483 = vperm.xlu0 %1482, %v1324
      %v1484 = vpop.permute.xlu0 %1483
      %1486 = vset.pattern.permute.xlu0 1
      %1487 = vperm.xlu0 %1486, %v1325
      %v1488 = vpop.permute.xlu0 %1487
      %1490 = vset.pattern.permute.xlu0 1
      %1491 = vperm.xlu0 %1490, %v1326
      %v1492 = vpop.permute.xlu0 %1491
      %1494 = vset.pattern.permute.xlu0 1
      %1495 = vperm.xlu0 %1494, %v1327
      %v1496 = vpop.permute.xlu0 %1495
      %1498 = vset.pattern.permute.xlu0 1
      %1499 = vperm.xlu0 %1498, %v1328
      %v1500 = vpop.permute.xlu0 %1499
      %1502 = vset.pattern.permute.xlu0 1
      %1503 = vperm.xlu0 %1502, %v1329
      %v1504 = vpop.permute.xlu0 %1503
      %v1506 = vmul.f32 %v1444, %v498
      %v1507 = vmul.f32 %v1448, %v498
      %v1508 = vmul.f32 %v1452, %v498
      %v1509 = vmul.f32 %v1456, %v498
      %v1510 = vmul.f32 %v1460, %v498
      %v1511 = vmul.f32 %v1464, %v498
      %v1512 = vmul.f32 %v1468, %v498
      %v1513 = vmul.f32 %v1472, %v498
      %v1514 = vmul.f32 %v1476, %v498
      %v1515 = vmul.f32 %v1480, %v498
      %v1516 = vmul.f32 %v1484, %v498
      %v1517 = vmul.f32 %v1488, %v498
      %v1518 = vmul.f32 %v1492, %v498
      %v1519 = vmul.f32 %v1496, %v498
      %v1520 = vmul.f32 %v1500, %v498
      %v1521 = vmul.f32 %v1504, %v498
      %v1522 = vadd.f32 %v1426, %v1506
      %v1523 = vadd.f32 %v1427, %v1507
      %v1524 = vadd.f32 %v1428, %v1508
      %v1525 = vadd.f32 %v1429, %v1509
      %v1526 = vadd.f32 %v1430, %v1510
      %v1527 = vadd.f32 %v1431, %v1511
      %v1528 = vadd.f32 %v1432, %v1512
      %v1529 = vadd.f32 %v1433, %v1513
      %v1530 = vadd.f32 %v1434, %v1514
      %v1531 = vadd.f32 %v1435, %v1515
      %v1532 = vadd.f32 %v1436, %v1516
      %v1533 = vadd.f32 %v1437, %v1517
      %v1534 = vadd.f32 %v1438, %v1518
      %v1535 = vadd.f32 %v1439, %v1519
      %v1536 = vadd.f32 %v1440, %v1520
      %v1537 = vadd.f32 %v1441, %v1521
      %v1538 = vmax.f32 %v1522, 0.0
      %v1539 = vmax.f32 %v1523, 0.0
      %v1540 = vmax.f32 %v1524, 0.0
      %v1541 = vmax.f32 %v1525, 0.0
      %v1542 = vmax.f32 %v1526, 0.0
      %v1543 = vmax.f32 %v1527, 0.0
      %v1544 = vmax.f32 %v1528, 0.0
      %v1545 = vmax.f32 %v1529, 0.0
      %v1546 = vmax.f32 %v1530, 0.0
      %v1547 = vmax.f32 %v1531, 0.0
      %v1548 = vmax.f32 %v1532, 0.0
      %v1549 = vmax.f32 %v1533, 0.0
      %v1550 = vmax.f32 %v1534, 0.0
      %v1551 = vmax.f32 %v1535, 0.0
      %v1552 = vmax.f32 %v1536, 0.0
      %v1553 = vmax.f32 %v1537, 0.0
      %v1555 = vsel %vm550, %v1538, 0
      %v1558 = vsel %vm550, %v1539, 0
      %v1561 = vsel %vm550, %v1540, 0
      %v1564 = vsel %vm550, %v1541, 0
      %v1567 = vsel %vm550, %v1542, 0
      %v1570 = vsel %vm550, %v1543, 0
      %v1573 = vsel %vm550, %v1544, 0
      %v1576 = vsel %vm550, %v1545, 0
      %v1579 = vsel %vm550, %v1546, 0
      %v1582 = vsel %vm550, %v1547, 0
      %v1585 = vsel %vm550, %v1548, 0
      %v1588 = vsel %vm550, %v1549, 0
      %v1591 = vsel %vm550, %v1550, 0
      %v1594 = vsel %vm550, %v1551, 0
      %v1597 = vsel %vm550, %v1552, 0
      %v1600 = vsel %vm550, %v1553, 0
      %1602 = vmatpush.msra.mxu0 0.0
      %1603 = vmatpush.msra.mxu0 0.0
      %1604 = vmatpush.msra.mxu0 0.0
      %1605 = vmatpush.msra.mxu0 0.0
      %1606 = vmatpush.msra.mxu0 0.0
      %1607 = vmatpush.msra.mxu0 0.0
      %1608 = vmatpush.msra.mxu0 0.0
      %1609 = vmatpush.msra.mxu0 0.0
      %1610 = vmatpush.msra.mxu0 %v291
      %1611 = vmatpush.msra.mxu0 %v290
      %1612 = vmatpush.msra.mxu0 %v289
      %1613 = vmatpush.msra.mxu0 %v288
      %1614 = vmatpush.msra.mxu0 %v287
      %1615 = vmatpush.msra.mxu0 %v286
      %1616 = vmatpush.msra.mxu0 %v285
      %1617 = vmatpush.msra.mxu0 %v284
      %1618 = vmatmul.f32.gmra.mxu0 %v1555
      %v1619 = vpop.f32.mrf.mxu0
      %v1620 = vadd.f32 %v548, %v1619
      %1621 = vmatmul.f32.gmra.mxu0 %v1558
      %v1622 = vpop.f32.mrf.mxu0
      %v1623 = vadd.f32 %v548, %v1622
      %1624 = vmatmul.f32.gmra.mxu0 %v1561
      %v1625 = vpop.f32.mrf.mxu0
      %v1626 = vadd.f32 %v548, %v1625
      %1627 = vmatmul.f32.gmra.mxu0 %v1564
      %v1628 = vpop.f32.mrf.mxu0
      %v1629 = vadd.f32 %v548, %v1628
      %1630 = vmatmul.f32.gmra.mxu0 %v1567
      %v1631 = vpop.f32.mrf.mxu0
      %v1632 = vadd.f32 %v548, %v1631
      %1633 = vmatmul.f32.gmra.mxu0 %v1570
      %v1634 = vpop.f32.mrf.mxu0
      %v1635 = vadd.f32 %v548, %v1634
      %1636 = vmatmul.f32.gmra.mxu0 %v1573
      %v1637 = vpop.f32.mrf.mxu0
      %v1638 = vadd.f32 %v548, %v1637
      %1639 = vmatmul.f32.gmra.mxu0 %v1576
      %v1640 = vpop.f32.mrf.mxu0
      %v1641 = vadd.f32 %v548, %v1640
      %1642 = vmatmul.f32.gmra.mxu0 %v1579
      %v1643 = vpop.f32.mrf.mxu0
      %v1644 = vadd.f32 %v548, %v1643
      %1645 = vmatmul.f32.gmra.mxu0 %v1582
      %v1646 = vpop.f32.mrf.mxu0
      %v1647 = vadd.f32 %v548, %v1646
      %1648 = vmatmul.f32.gmra.mxu0 %v1585
      %v1649 = vpop.f32.mrf.mxu0
      %v1650 = vadd.f32 %v548, %v1649
      %1651 = vmatmul.f32.gmra.mxu0 %v1588
      %v1652 = vpop.f32.mrf.mxu0
      %v1653 = vadd.f32 %v548, %v1652
      %1654 = vmatmul.f32.gmra.mxu0 %v1591
      %v1655 = vpop.f32.mrf.mxu0
      %v1656 = vadd.f32 %v548, %v1655
      %1657 = vmatmul.f32.gmra.mxu0 %v1594
      %v1658 = vpop.f32.mrf.mxu0
      %v1659 = vadd.f32 %v548, %v1658
      %1660 = vmatmul.f32.gmra.mxu0 %v1597
      %v1661 = vpop.f32.mrf.mxu0
      %v1662 = vadd.f32 %v548, %v1661
      %1663 = vmatmul.f32.gmra.mxu0 %v1600
      %v1664 = vpop.f32.mrf.mxu0
      %v1665 = vadd.f32 %v548, %v1664
      %1666 = vdwg.mxu0
      %v1667 = vmax.f32 %v1620, 0.0
      %v1668 = vmax.f32 %v1623, 0.0
      %v1669 = vmax.f32 %v1626, 0.0
      %v1670 = vmax.f32 %v1629, 0.0
      %v1671 = vmax.f32 %v1632, 0.0
      %v1672 = vmax.f32 %v1635, 0.0
      %v1673 = vmax.f32 %v1638, 0.0
      %v1674 = vmax.f32 %v1641, 0.0
      %v1675 = vmax.f32 %v1644, 0.0
      %v1676 = vmax.f32 %v1647, 0.0
      %v1677 = vmax.f32 %v1650, 0.0
      %v1678 = vmax.f32 %v1653, 0.0
      %v1679 = vmax.f32 %v1656, 0.0
      %v1680 = vmax.f32 %v1659, 0.0
      %v1681 = vmax.f32 %v1662, 0.0
      %v1682 = vmax.f32 %v1665, 0.0
      %v1684 = vsel %vm550, %v1667, 0
      %v1687 = vsel %vm550, %v1668, 0
      %v1690 = vsel %vm550, %v1669, 0
      %v1693 = vsel %vm550, %v1670, 0
      %v1696 = vsel %vm550, %v1671, 0
      %v1699 = vsel %vm550, %v1672, 0
      %v1702 = vsel %vm550, %v1673, 0
      %v1705 = vsel %vm550, %v1674, 0
      %v1708 = vsel %vm550, %v1675, 0
      %v1711 = vsel %vm550, %v1676, 0
      %v1714 = vsel %vm550, %v1677, 0
      %v1717 = vsel %vm550, %v1678, 0
      %v1720 = vsel %vm550, %v1679, 0
      %v1723 = vsel %vm550, %v1680, 0
      %v1726 = vsel %vm550, %v1681, 0
      %v1729 = vsel %vm550, %v1682, 0
      %1731 = vmatpush.msra.mxu0 0.0
      %1732 = vmatpush.msra.mxu0 0.0
      %1733 = vmatpush.msra.mxu0 0.0
      %1734 = vmatpush.msra.mxu0 0.0
      %1735 = vmatpush.msra.mxu0 0.0
      %1736 = vmatpush.msra.mxu0 0.0
      %1737 = vmatpush.msra.mxu0 0.0
      %1738 = vmatpush.msra.mxu0 0.0
      %1739 = vmatpush.msra.mxu0 %v300
      %1740 = vmatpush.msra.mxu0 %v299
      %1741 = vmatpush.msra.mxu0 %v298
      %1742 = vmatpush.msra.mxu0 %v297
      %1743 = vmatpush.msra.mxu0 %v296
      %1744 = vmatpush.msra.mxu0 %v295
      %1745 = vmatpush.msra.mxu0 %v294
      %1746 = vmatpush.msra.mxu0 %v293
      %1747 = vmatmul.f32.gmra.mxu0 %v1684
      %v1748 = vpop.f32.mrf.mxu0
      %v1749 = vadd.f32 %v681, %v1748
      %1750 = vmatmul.f32.gmra.mxu0 %v1687
      %v1751 = vpop.f32.mrf.mxu0
      %v1752 = vadd.f32 %v681, %v1751
      %1753 = vmatmul.f32.gmra.mxu0 %v1690
      %v1754 = vpop.f32.mrf.mxu0
      %v1755 = vadd.f32 %v681, %v1754
      %1756 = vmatmul.f32.gmra.mxu0 %v1693
      %v1757 = vpop.f32.mrf.mxu0
      %v1758 = vadd.f32 %v681, %v1757
      %1759 = vmatmul.f32.gmra.mxu0 %v1696
      %v1760 = vpop.f32.mrf.mxu0
      %v1761 = vadd.f32 %v681, %v1760
      %1762 = vmatmul.f32.gmra.mxu0 %v1699
      %v1763 = vpop.f32.mrf.mxu0
      %v1764 = vadd.f32 %v681, %v1763
      %1765 = vmatmul.f32.gmra.mxu0 %v1702
      %v1766 = vpop.f32.mrf.mxu0
      %v1767 = vadd.f32 %v681, %v1766
      %1768 = vmatmul.f32.gmra.mxu0 %v1705
      %v1769 = vpop.f32.mrf.mxu0
      %v1770 = vadd.f32 %v681, %v1769
      %1771 = vmatmul.f32.gmra.mxu0 %v1708
      %v1772 = vpop.f32.mrf.mxu0
      %v1773 = vadd.f32 %v681, %v1772
      %1774 = vmatmul.f32.gmra.mxu0 %v1711
      %v1775 = vpop.f32.mrf.mxu0
      %v1776 = vadd.f32 %v681, %v1775
      %1777 = vmatmul.f32.gmra.mxu0 %v1714
      %v1778 = vpop.f32.mrf.mxu0
      %v1779 = vadd.f32 %v681, %v1778
      %1780 = vmatmul.f32.gmra.mxu0 %v1717
      %v1781 = vpop.f32.mrf.mxu0
      %v1782 = vadd.f32 %v681, %v1781
      %1783 = vmatmul.f32.gmra.mxu0 %v1720
      %v1784 = vpop.f32.mrf.mxu0
      %v1785 = vadd.f32 %v681, %v1784
      %1786 = vmatmul.f32.gmra.mxu0 %v1723
      %v1787 = vpop.f32.mrf.mxu0
      %v1788 = vadd.f32 %v681, %v1787
      %1789 = vmatmul.f32.gmra.mxu0 %v1726
      %v1790 = vpop.f32.mrf.mxu0
      %v1791 = vadd.f32 %v681, %v1790
      %1792 = vmatmul.f32.gmra.mxu0 %v1729
      %v1793 = vpop.f32.mrf.mxu0
      %v1794 = vadd.f32 %v681, %v1793
      %1795 = vdwg.mxu0
      %s1796 = scalar_lea.vmem %s280, 256
      %1797 = vst.msk [vmem:[%s1796] sm:$0xff] %vm796, %v1749
      %1798 = vst.msk [vmem:[%s1796 + $0x8] sm:$0xff] %vm796, %v1752
      %1799 = vst.msk [vmem:[%s1796 + $0x10] sm:$0xff] %vm796, %v1755
      %1800 = vst.msk [vmem:[%s1796 + $0x18] sm:$0xff] %vm796, %v1758
      %1801 = vst.msk [vmem:[%s1796 + $0x20] sm:$0xff] %vm796, %v1761
      %1802 = vst.msk [vmem:[%s1796 + $0x28] sm:$0xff] %vm796, %v1764
      %1803 = vst.msk [vmem:[%s1796 + $0x30] sm:$0xff] %vm796, %v1767
      %1804 = vst.msk [vmem:[%s1796 + $0x38] sm:$0xff] %vm796, %v1770
      %1805 = vst.msk [vmem:[%s1796 + $0x40] sm:$0xff] %vm796, %v1773
      %1806 = vst.msk [vmem:[%s1796 + $0x48] sm:$0xff] %vm796, %v1776
      %1807 = vst.msk [vmem:[%s1796 + $0x50] sm:$0xff] %vm796, %v1779
      %1808 = vst.msk [vmem:[%s1796 + $0x58] sm:$0xff] %vm796, %v1782
      %1809 = vst.msk [vmem:[%s1796 + $0x60] sm:$0xff] %vm796, %v1785
      %1810 = vst.msk [vmem:[%s1796 + $0x68] sm:$0xff] %vm796, %v1788
      %1811 = vst.msk [vmem:[%s1796 + $0x70] sm:$0xff] %vm796, %v1791
      %1812 = vst.msk [vmem:[%s1796 + $0x78] sm:$0xff] %vm796, %v1794
      %s1813 = scalar_lea.vmem %s274, 384
      %v1814 = vld [vmem:[%s1813] sm:$0xff]
      %v1815 = vld [vmem:[%s1813 + $0x8] sm:$0xff]
      %v1816 = vld [vmem:[%s1813 + $0x10] sm:$0xff]
      %v1817 = vld [vmem:[%s1813 + $0x18] sm:$0xff]
      %v1818 = vld [vmem:[%s1813 + $0x20] sm:$0xff]
      %v1819 = vld [vmem:[%s1813 + $0x28] sm:$0xff]
      %v1820 = vld [vmem:[%s1813 + $0x30] sm:$0xff]
      %v1821 = vld [vmem:[%s1813 + $0x38] sm:$0xff]
      %v1822 = vld [vmem:[%s1813 + $0x40] sm:$0xff]
      %v1823 = vld [vmem:[%s1813 + $0x48] sm:$0xff]
      %v1824 = vld [vmem:[%s1813 + $0x50] sm:$0xff]
      %v1825 = vld [vmem:[%s1813 + $0x58] sm:$0xff]
      %v1826 = vld [vmem:[%s1813 + $0x60] sm:$0xff]
      %v1827 = vld [vmem:[%s1813 + $0x68] sm:$0xff]
      %v1828 = vld [vmem:[%s1813 + $0x70] sm:$0xff]
      %v1829 = vld [vmem:[%s1813 + $0x78] sm:$0xff]
      %1831 = vset.pattern.permute.xlu0 0
      %1832 = vperm.xlu0 %1831, %v1814
      %v1833 = vpop.permute.xlu0 %1832
      %1836 = vset.pattern.permute.xlu0 0
      %1837 = vperm.xlu0 %1836, %v1815
      %v1838 = vpop.permute.xlu0 %1837
      %1841 = vset.pattern.permute.xlu0 0
      %1842 = vperm.xlu0 %1841, %v1816
      %v1843 = vpop.permute.xlu0 %1842
      %1846 = vset.pattern.permute.xlu0 0
      %1847 = vperm.xlu0 %1846, %v1817
      %v1848 = vpop.permute.xlu0 %1847
      %1851 = vset.pattern.permute.xlu0 0
      %1852 = vperm.xlu0 %1851, %v1818
      %v1853 = vpop.permute.xlu0 %1852
      %1856 = vset.pattern.permute.xlu0 0
      %1857 = vperm.xlu0 %1856, %v1819
      %v1858 = vpop.permute.xlu0 %1857
      %1861 = vset.pattern.permute.xlu0 0
      %1862 = vperm.xlu0 %1861, %v1820
      %v1863 = vpop.permute.xlu0 %1862
      %1866 = vset.pattern.permute.xlu0 0
      %1867 = vperm.xlu0 %1866, %v1821
      %v1868 = vpop.permute.xlu0 %1867
      %1871 = vset.pattern.permute.xlu0 0
      %1872 = vperm.xlu0 %1871, %v1822
      %v1873 = vpop.permute.xlu0 %1872
      %1876 = vset.pattern.permute.xlu0 0
      %1877 = vperm.xlu0 %1876, %v1823
      %v1878 = vpop.permute.xlu0 %1877
      %1881 = vset.pattern.permute.xlu0 0
      %1882 = vperm.xlu0 %1881, %v1824
      %v1883 = vpop.permute.xlu0 %1882
      %1886 = vset.pattern.permute.xlu0 0
      %1887 = vperm.xlu0 %1886, %v1825
      %v1888 = vpop.permute.xlu0 %1887
      %1891 = vset.pattern.permute.xlu0 0
      %1892 = vperm.xlu0 %1891, %v1826
      %v1893 = vpop.permute.xlu0 %1892
      %1896 = vset.pattern.permute.xlu0 0
      %1897 = vperm.xlu0 %1896, %v1827
      %v1898 = vpop.permute.xlu0 %1897
      %1901 = vset.pattern.permute.xlu0 0
      %1902 = vperm.xlu0 %1901, %v1828
      %v1903 = vpop.permute.xlu0 %1902
      %1906 = vset.pattern.permute.xlu0 0
      %1907 = vperm.xlu0 %1906, %v1829
      %v1908 = vpop.permute.xlu0 %1907
      %v1910 = vmul.f32 %v1833, %v398
      %v1911 = vmul.f32 %v1838, %v398
      %v1912 = vmul.f32 %v1843, %v398
      %v1913 = vmul.f32 %v1848, %v398
      %v1914 = vmul.f32 %v1853, %v398
      %v1915 = vmul.f32 %v1858, %v398
      %v1916 = vmul.f32 %v1863, %v398
      %v1917 = vmul.f32 %v1868, %v398
      %v1918 = vmul.f32 %v1873, %v398
      %v1919 = vmul.f32 %v1878, %v398
      %v1920 = vmul.f32 %v1883, %v398
      %v1921 = vmul.f32 %v1888, %v398
      %v1922 = vmul.f32 %v1893, %v398
      %v1923 = vmul.f32 %v1898, %v398
      %v1924 = vmul.f32 %v1903, %v398
      %v1925 = vmul.f32 %v1908, %v398
      %v1926 = vadd.f32 %v416, %v1910
      %v1927 = vadd.f32 %v416, %v1911
      %v1928 = vadd.f32 %v416, %v1912
      %v1929 = vadd.f32 %v416, %v1913
      %v1930 = vadd.f32 %v416, %v1914
      %v1931 = vadd.f32 %v416, %v1915
      %v1932 = vadd.f32 %v416, %v1916
      %v1933 = vadd.f32 %v416, %v1917
      %v1934 = vadd.f32 %v416, %v1918
      %v1935 = vadd.f32 %v416, %v1919
      %v1936 = vadd.f32 %v416, %v1920
      %v1937 = vadd.f32 %v416, %v1921
      %v1938 = vadd.f32 %v416, %v1922
      %v1939 = vadd.f32 %v416, %v1923
      %v1940 = vadd.f32 %v416, %v1924
      %v1941 = vadd.f32 %v416, %v1925
      %1942 = vset.pattern.permute.xlu0 1
      %1943 = vperm.xlu0 %1942, %v1814
      %v1944 = vpop.permute.xlu0 %1943
      %1946 = vset.pattern.permute.xlu0 1
      %1947 = vperm.xlu0 %1946, %v1815
      %v1948 = vpop.permute.xlu0 %1947
      %1950 = vset.pattern.permute.xlu0 1
      %1951 = vperm.xlu0 %1950, %v1816
      %v1952 = vpop.permute.xlu0 %1951
      %1954 = vset.pattern.permute.xlu0 1
      %1955 = vperm.xlu0 %1954, %v1817
      %v1956 = vpop.permute.xlu0 %1955
      %1958 = vset.pattern.permute.xlu0 1
      %1959 = vperm.xlu0 %1958, %v1818
      %v1960 = vpop.permute.xlu0 %1959
      %1962 = vset.pattern.permute.xlu0 1
      %1963 = vperm.xlu0 %1962, %v1819
      %v1964 = vpop.permute.xlu0 %1963
      %1966 = vset.pattern.permute.xlu0 1
      %1967 = vperm.xlu0 %1966, %v1820
      %v1968 = vpop.permute.xlu0 %1967
      %1970 = vset.pattern.permute.xlu0 1
      %1971 = vperm.xlu0 %1970, %v1821
      %v1972 = vpop.permute.xlu0 %1971
      %1974 = vset.pattern.permute.xlu0 1
      %1975 = vperm.xlu0 %1974, %v1822
      %v1976 = vpop.permute.xlu0 %1975
      %1978 = vset.pattern.permute.xlu0 1
      %1979 = vperm.xlu0 %1978, %v1823
      %v1980 = vpop.permute.xlu0 %1979
      %1982 = vset.pattern.permute.xlu0 1
      %1983 = vperm.xlu0 %1982, %v1824
      %v1984 = vpop.permute.xlu0 %1983
      %1986 = vset.pattern.permute.xlu0 1
      %1987 = vperm.xlu0 %1986, %v1825
      %v1988 = vpop.permute.xlu0 %1987
      %1990 = vset.pattern.permute.xlu0 1
      %1991 = vperm.xlu0 %1990, %v1826
      %v1992 = vpop.permute.xlu0 %1991
      %1994 = vset.pattern.permute.xlu0 1
      %1995 = vperm.xlu0 %1994, %v1827
      %v1996 = vpop.permute.xlu0 %1995
      %1998 = vset.pattern.permute.xlu0 1
      %1999 = vperm.xlu0 %1998, %v1828
      %v2000 = vpop.permute.xlu0 %1999
      %2002 = vset.pattern.permute.xlu0 1
      %2003 = vperm.xlu0 %2002, %v1829
      %v2004 = vpop.permute.xlu0 %2003
      %v2006 = vmul.f32 %v1944, %v498
      %v2007 = vmul.f32 %v1948, %v498
      %v2008 = vmul.f32 %v1952, %v498
      %v2009 = vmul.f32 %v1956, %v498
      %v2010 = vmul.f32 %v1960, %v498
      %v2011 = vmul.f32 %v1964, %v498
      %v2012 = vmul.f32 %v1968, %v498
      %v2013 = vmul.f32 %v1972, %v498
      %v2014 = vmul.f32 %v1976, %v498
      %v2015 = vmul.f32 %v1980, %v498
      %v2016 = vmul.f32 %v1984, %v498
      %v2017 = vmul.f32 %v1988, %v498
      %v2018 = vmul.f32 %v1992, %v498
      %v2019 = vmul.f32 %v1996, %v498
      %v2020 = vmul.f32 %v2000, %v498
      %v2021 = vmul.f32 %v2004, %v498
      %v2022 = vadd.f32 %v1926, %v2006
      %v2023 = vadd.f32 %v1927, %v2007
      %v2024 = vadd.f32 %v1928, %v2008
      %v2025 = vadd.f32 %v1929, %v2009
      %v2026 = vadd.f32 %v1930, %v2010
      %v2027 = vadd.f32 %v1931, %v2011
      %v2028 = vadd.f32 %v1932, %v2012
      %v2029 = vadd.f32 %v1933, %v2013
      %v2030 = vadd.f32 %v1934, %v2014
      %v2031 = vadd.f32 %v1935, %v2015
      %v2032 = vadd.f32 %v1936, %v2016
      %v2033 = vadd.f32 %v1937, %v2017
      %v2034 = vadd.f32 %v1938, %v2018
      %v2035 = vadd.f32 %v1939, %v2019
      %v2036 = vadd.f32 %v1940, %v2020
      %v2037 = vadd.f32 %v1941, %v2021
      %v2038 = vmax.f32 %v2022, 0.0
      %v2039 = vmax.f32 %v2023, 0.0
      %v2040 = vmax.f32 %v2024, 0.0
      %v2041 = vmax.f32 %v2025, 0.0
      %v2042 = vmax.f32 %v2026, 0.0
      %v2043 = vmax.f32 %v2027, 0.0
      %v2044 = vmax.f32 %v2028, 0.0
      %v2045 = vmax.f32 %v2029, 0.0
      %v2046 = vmax.f32 %v2030, 0.0
      %v2047 = vmax.f32 %v2031, 0.0
      %v2048 = vmax.f32 %v2032, 0.0
      %v2049 = vmax.f32 %v2033, 0.0
      %v2050 = vmax.f32 %v2034, 0.0
      %v2051 = vmax.f32 %v2035, 0.0
      %v2052 = vmax.f32 %v2036, 0.0
      %v2053 = vmax.f32 %v2037, 0.0
      %v2055 = vsel %vm550, %v2038, 0
      %v2058 = vsel %vm550, %v2039, 0
      %v2061 = vsel %vm550, %v2040, 0
      %v2064 = vsel %vm550, %v2041, 0
      %v2067 = vsel %vm550, %v2042, 0
      %v2070 = vsel %vm550, %v2043, 0
      %v2073 = vsel %vm550, %v2044, 0
      %v2076 = vsel %vm550, %v2045, 0
      %v2079 = vsel %vm550, %v2046, 0
      %v2082 = vsel %vm550, %v2047, 0
      %v2085 = vsel %vm550, %v2048, 0
      %v2088 = vsel %vm550, %v2049, 0
      %v2091 = vsel %vm550, %v2050, 0
      %v2094 = vsel %vm550, %v2051, 0
      %v2097 = vsel %vm550, %v2052, 0
      %v2100 = vsel %vm550, %v2053, 0
      %2102 = vmatpush.msra.mxu0 0.0
      %2103 = vmatpush.msra.mxu0 0.0
      %2104 = vmatpush.msra.mxu0 0.0
      %2105 = vmatpush.msra.mxu0 0.0
      %2106 = vmatpush.msra.mxu0 0.0
      %2107 = vmatpush.msra.mxu0 0.0
      %2108 = vmatpush.msra.mxu0 0.0
      %2109 = vmatpush.msra.mxu0 0.0
      %2110 = vmatpush.msra.mxu0 %v291
      %2111 = vmatpush.msra.mxu0 %v290
      %2112 = vmatpush.msra.mxu0 %v289
      %2113 = vmatpush.msra.mxu0 %v288
      %2114 = vmatpush.msra.mxu0 %v287
      %2115 = vmatpush.msra.mxu0 %v286
      %2116 = vmatpush.msra.mxu0 %v285
      %2117 = vmatpush.msra.mxu0 %v284
      %2118 = vmatmul.f32.gmra.mxu0 %v2055
      %v2119 = vpop.f32.mrf.mxu0
      %v2120 = vadd.f32 %v548, %v2119
      %2121 = vmatmul.f32.gmra.mxu0 %v2058
      %v2122 = vpop.f32.mrf.mxu0
      %v2123 = vadd.f32 %v548, %v2122
      %2124 = vmatmul.f32.gmra.mxu0 %v2061
      %v2125 = vpop.f32.mrf.mxu0
      %v2126 = vadd.f32 %v548, %v2125
      %2127 = vmatmul.f32.gmra.mxu0 %v2064
      %v2128 = vpop.f32.mrf.mxu0
      %v2129 = vadd.f32 %v548, %v2128
      %2130 = vmatmul.f32.gmra.mxu0 %v2067
      %v2131 = vpop.f32.mrf.mxu0
      %v2132 = vadd.f32 %v548, %v2131
      %2133 = vmatmul.f32.gmra.mxu0 %v2070
      %v2134 = vpop.f32.mrf.mxu0
      %v2135 = vadd.f32 %v548, %v2134
      %2136 = vmatmul.f32.gmra.mxu0 %v2073
      %v2137 = vpop.f32.mrf.mxu0
      %v2138 = vadd.f32 %v548, %v2137
      %2139 = vmatmul.f32.gmra.mxu0 %v2076
      %v2140 = vpop.f32.mrf.mxu0
      %v2141 = vadd.f32 %v548, %v2140
      %2142 = vmatmul.f32.gmra.mxu0 %v2079
      %v2143 = vpop.f32.mrf.mxu0
      %v2144 = vadd.f32 %v548, %v2143
      %2145 = vmatmul.f32.gmra.mxu0 %v2082
      %v2146 = vpop.f32.mrf.mxu0
      %v2147 = vadd.f32 %v548, %v2146
      %2148 = vmatmul.f32.gmra.mxu0 %v2085
      %v2149 = vpop.f32.mrf.mxu0
      %v2150 = vadd.f32 %v548, %v2149
      %2151 = vmatmul.f32.gmra.mxu0 %v2088
      %v2152 = vpop.f32.mrf.mxu0
      %v2153 = vadd.f32 %v548, %v2152
      %2154 = vmatmul.f32.gmra.mxu0 %v2091
      %v2155 = vpop.f32.mrf.mxu0
      %v2156 = vadd.f32 %v548, %v2155
      %2157 = vmatmul.f32.gmra.mxu0 %v2094
      %v2158 = vpop.f32.mrf.mxu0
      %v2159 = vadd.f32 %v548, %v2158
      %2160 = vmatmul.f32.gmra.mxu0 %v2097
      %v2161 = vpop.f32.mrf.mxu0
      %v2162 = vadd.f32 %v548, %v2161
      %2163 = vmatmul.f32.gmra.mxu0 %v2100
      %v2164 = vpop.f32.mrf.mxu0
      %v2165 = vadd.f32 %v548, %v2164
      %2166 = vdwg.mxu0
      %v2167 = vmax.f32 %v2120, 0.0
      %v2168 = vmax.f32 %v2123, 0.0
      %v2169 = vmax.f32 %v2126, 0.0
      %v2170 = vmax.f32 %v2129, 0.0
      %v2171 = vmax.f32 %v2132, 0.0
      %v2172 = vmax.f32 %v2135, 0.0
      %v2173 = vmax.f32 %v2138, 0.0
      %v2174 = vmax.f32 %v2141, 0.0
      %v2175 = vmax.f32 %v2144, 0.0
      %v2176 = vmax.f32 %v2147, 0.0
      %v2177 = vmax.f32 %v2150, 0.0
      %v2178 = vmax.f32 %v2153, 0.0
      %v2179 = vmax.f32 %v2156, 0.0
      %v2180 = vmax.f32 %v2159, 0.0
      %v2181 = vmax.f32 %v2162, 0.0
      %v2182 = vmax.f32 %v2165, 0.0
      %v2184 = vsel %vm550, %v2167, 0
      %v2187 = vsel %vm550, %v2168, 0
      %v2190 = vsel %vm550, %v2169, 0
      %v2193 = vsel %vm550, %v2170, 0
      %v2196 = vsel %vm550, %v2171, 0
      %v2199 = vsel %vm550, %v2172, 0
      %v2202 = vsel %vm550, %v2173, 0
      %v2205 = vsel %vm550, %v2174, 0
      %v2208 = vsel %vm550, %v2175, 0
      %v2211 = vsel %vm550, %v2176, 0
      %v2214 = vsel %vm550, %v2177, 0
      %v2217 = vsel %vm550, %v2178, 0
      %v2220 = vsel %vm550, %v2179, 0
      %v2223 = vsel %vm550, %v2180, 0
      %v2226 = vsel %vm550, %v2181, 0
      %v2229 = vsel %vm550, %v2182, 0
      %2231 = vmatpush.msra.mxu0 0.0
      %2232 = vmatpush.msra.mxu0 0.0
      %2233 = vmatpush.msra.mxu0 0.0
      %2234 = vmatpush.msra.mxu0 0.0
      %2235 = vmatpush.msra.mxu0 0.0
      %2236 = vmatpush.msra.mxu0 0.0
      %2237 = vmatpush.msra.mxu0 0.0
      %2238 = vmatpush.msra.mxu0 0.0
      %2239 = vmatpush.msra.mxu0 %v300
      %2240 = vmatpush.msra.mxu0 %v299
      %2241 = vmatpush.msra.mxu0 %v298
      %2242 = vmatpush.msra.mxu0 %v297
      %2243 = vmatpush.msra.mxu0 %v296
      %2244 = vmatpush.msra.mxu0 %v295
      %2245 = vmatpush.msra.mxu0 %v294
      %2246 = vmatpush.msra.mxu0 %v293
      %2247 = vmatmul.f32.gmra.mxu0 %v2184
      %v2248 = vpop.f32.mrf.mxu0
      %v2249 = vadd.f32 %v681, %v2248
      %2250 = vmatmul.f32.gmra.mxu0 %v2187
      %v2251 = vpop.f32.mrf.mxu0
      %v2252 = vadd.f32 %v681, %v2251
      %2253 = vmatmul.f32.gmra.mxu0 %v2190
      %v2254 = vpop.f32.mrf.mxu0
      %v2255 = vadd.f32 %v681, %v2254
      %2256 = vmatmul.f32.gmra.mxu0 %v2193
      %v2257 = vpop.f32.mrf.mxu0
      %v2258 = vadd.f32 %v681, %v2257
      %2259 = vmatmul.f32.gmra.mxu0 %v2196
      %v2260 = vpop.f32.mrf.mxu0
      %v2261 = vadd.f32 %v681, %v2260
      %2262 = vmatmul.f32.gmra.mxu0 %v2199
      %v2263 = vpop.f32.mrf.mxu0
      %v2264 = vadd.f32 %v681, %v2263
      %2265 = vmatmul.f32.gmra.mxu0 %v2202
      %v2266 = vpop.f32.mrf.mxu0
      %v2267 = vadd.f32 %v681, %v2266
      %2268 = vmatmul.f32.gmra.mxu0 %v2205
      %v2269 = vpop.f32.mrf.mxu0
      %v2270 = vadd.f32 %v681, %v2269
      %2271 = vmatmul.f32.gmra.mxu0 %v2208
      %v2272 = vpop.f32.mrf.mxu0
      %v2273 = vadd.f32 %v681, %v2272
      %2274 = vmatmul.f32.gmra.mxu0 %v2211
      %v2275 = vpop.f32.mrf.mxu0
      %v2276 = vadd.f32 %v681, %v2275
      %2277 = vmatmul.f32.gmra.mxu0 %v2214
      %v2278 = vpop.f32.mrf.mxu0
      %v2279 = vadd.f32 %v681, %v2278
      %2280 = vmatmul.f32.gmra.mxu0 %v2217
      %v2281 = vpop.f32.mrf.mxu0
      %v2282 = vadd.f32 %v681, %v2281
      %2283 = vmatmul.f32.gmra.mxu0 %v2220
      %v2284 = vpop.f32.mrf.mxu0
      %v2285 = vadd.f32 %v681, %v2284
      %2286 = vmatmul.f32.gmra.mxu0 %v2223
      %v2287 = vpop.f32.mrf.mxu0
      %v2288 = vadd.f32 %v681, %v2287
      %2289 = vmatmul.f32.gmra.mxu0 %v2226
      %v2290 = vpop.f32.mrf.mxu0
      %v2291 = vadd.f32 %v681, %v2290
      %2292 = vmatmul.f32.gmra.mxu0 %v2229
      %v2293 = vpop.f32.mrf.mxu0
      %v2294 = vadd.f32 %v681, %v2293
      %2295 = vdwg.mxu0
      %s2296 = scalar_lea.vmem %s280, 384
      %2297 = vst.msk [vmem:[%s2296] sm:$0xff] %vm796, %v2249
      %2298 = vst.msk [vmem:[%s2296 + $0x8] sm:$0xff] %vm796, %v2252
      %2299 = vst.msk [vmem:[%s2296 + $0x10] sm:$0xff] %vm796, %v2255
      %2300 = vst.msk [vmem:[%s2296 + $0x18] sm:$0xff] %vm796, %v2258
      %2301 = vst.msk [vmem:[%s2296 + $0x20] sm:$0xff] %vm796, %v2261
      %2302 = vst.msk [vmem:[%s2296 + $0x28] sm:$0xff] %vm796, %v2264
      %2303 = vst.msk [vmem:[%s2296 + $0x30] sm:$0xff] %vm796, %v2267
      %2304 = vst.msk [vmem:[%s2296 + $0x38] sm:$0xff] %vm796, %v2270
      %2305 = vst.msk [vmem:[%s2296 + $0x40] sm:$0xff] %vm796, %v2273
      %2306 = vst.msk [vmem:[%s2296 + $0x48] sm:$0xff] %vm796, %v2276
      %2307 = vst.msk [vmem:[%s2296 + $0x50] sm:$0xff] %vm796, %v2279
      %2308 = vst.msk [vmem:[%s2296 + $0x58] sm:$0xff] %vm796, %v2282
      %2309 = vst.msk [vmem:[%s2296 + $0x60] sm:$0xff] %vm796, %v2285
      %2310 = vst.msk [vmem:[%s2296 + $0x68] sm:$0xff] %vm796, %v2288
      %2311 = vst.msk [vmem:[%s2296 + $0x70] sm:$0xff] %vm796, %v2291
      %2312 = vst.msk [vmem:[%s2296 + $0x78] sm:$0xff] %vm796, %v2294
      %s2313 = smul.u32 64, %s18
      %p2314 = scmp.lt.s32.totalorder %s2313, 127
      %s2315 = scalar_select %p2314, %s2313, 127
      %s2316 = smul.addr %s2315, 8
      %s2317 = scalar_lea.vmem %s7, %s2316
      // Predicated region
      $region49: #{_aux_forward_impl.1} parent=47 // pred_check
        %p2318 = pneg %p188
      $region50: #{_aux_forward_impl.1} parent=47 // pred_check_branch
        %2320 = sbr.rel (%p2318) target = $region52
      $region51: #{_aux_forward_impl.1} parent=47 // pred_region
        %s2321 = smul.u32 64, %s18
      $region52: #{_aux_forward_impl.1} parent=47 // pred_fallthru
        _
    $region48: #{_aux_forward_impl.1} parent=5 // pred_fallthru
      _
    %p2322 = scmp.le.s32.totalorder 2, %s13
    // Predicated region
    $region53: #{_aux_forward_impl.1} parent=5 // pred_check
      %p2323 = pneg %p2322
    $region54: #{_aux_forward_impl.1} parent=5 // pred_check_branch
      %2325 = sbr.rel (%p2323) target = $region56
    $region55: #{_aux_forward_impl.1} parent=5 // pred_region
      %s2326 = ssub.s32 %s13, 2
      // Predicated region
      $region57: #{_aux_forward_impl.1} parent=55 // pred_check
        %p2327 = pneg %p194
      $region58: #{_aux_forward_impl.1} parent=55 // pred_check_branch
        %2329 = sbr.rel (%p2327) target = $region60
      $region59: #{_aux_forward_impl.1} parent=55 // pred_region
        %s2330 = smul.u32 64, %s19
        %p2331 = scmp.lt.s32.totalorder %s2330, 127
        %s2332 = scalar_select %p2331, %s2330, 127
        %s2333 = smul.addr %s2332, 8
        %s2334 = scalar_lea.vmem %s7, %s2333
      $region60: #{_aux_forward_impl.1} parent=55 // pred_fallthru
        _
    $region56: #{_aux_forward_impl.1} parent=5 // pred_fallthru
      _
  $region6: #{_aux_forward_impl.1} parent=0 // loop_footer
    %s17 = sadd.s32 1, %s13
  $region7: #{_aux_forward_impl.1} parent=0 // loop_footer_branch
    %12 = sbr.rel target = $region3
  $region8: #{_aux_forward_impl.1} parent=0 // loop_exit
    _

</llo_original>
